<compile_context>
chip_gen: v5e
topology: v5e:2x2
jax: 0.10.0
libtpu: 0.0.40
codegen_flags: <defaults>
</compile_context>

<pallas_src>
import jax
import jax.numpy as jnp
from jax.experimental import pallas as pl
from jax.experimental.pallas import tpu as pltpu


# ---------------------------------------------------------------------------
# Kernel: 2-layer LSTM recurrence + final FC + sigmoid for ONE batch block.
#   x_ref   : (1, T*BB, D)  time-major within the block, row t*BB + j
#   wih0    : (D, 4H)   whh0 : (H, 4H)   b0 : (1, 4H)  (= b_ih0 + b_hh0)
#   wih1    : (H, 4H)   whh1 : (H, 4H)   b1 : (1, 4H)
#   wfc     : (1, H) when output_size == 1, else (H, OUT);  bfc : (1, OUT)
#   out_ref : (BB, OUT)
# ---------------------------------------------------------------------------
def lstm_kernel(x_ref, wih0_ref, whh0_ref, b0_ref,
                wih1_ref, whh1_ref, b1_ref, wfc_ref, bfc_ref, out_ref):
    BB, OUT = out_ref.shape
    TB = x_ref.shape[1]
    T = TB // BB
    H = whh0_ref.shape[0]
    G = 4 * H

    # --- Hoisted constants: sigmoid(x) = 0.5 * tanh(0.5 * x) + 0.5 ----------
    # PyTorch gate order is (i, f, g, o); only the g block keeps plain tanh.
    lane = jax.lax.broadcasted_iota(jnp.int32, (1, G), 1)
    is_g = (lane >= 2 * H) & (lane < 3 * H)
    pre = jnp.where(is_g, 1.0, 0.5)          # per-column pre-scale
    post_scale = pre
    post_bias = jnp.where(is_g, 0.0, 0.5)

    # Fold the pre-scale into the resident weights / biases ONCE (outside the
    # serial loop) so the loop body does one tanh + one hoisted affine.
    wih0 = wih0_ref[...] * pre
    whh0 = whh0_ref[...] * pre
    wih1 = wih1_ref[...] * pre
    whh1 = whh1_ref[...] * pre
    # TODO(synk): on v6e/v7x the resident weights could be cast to bf16 here
    # (numerically equivalent to default-precision f32 MXU passes); kept f32
    # since the MXU has large slack at these shapes.

    # Hoisted layer-0 input projection: one matmul for all T steps (off the
    # serial chain), bias b0 folded in.
    # TODO(synk): at production T/B/H chunk this over a time grid axis so the
    # (T*BB, 4H) live value stays inside v7x's smaller (64 MiB) VMEM.
    gates_x = (jnp.dot(x_ref[0], wih0, preferred_element_type=jnp.float32)
               + b0_ref[...] * pre)                              # (T*BB, 4H)

    # Hoisted bias broadcast for layer 1 (JAX does not CSE broadcasts).
    b1 = jnp.broadcast_to(b1_ref[...] * pre, (BB, G))

    def gate_act(gates, c):
        # Single full-width EUP push for all four gates; i/f/o sigmoids are
        # recovered as 0.5*t + 0.5, the g block is plain tanh.
        a = post_scale * jnp.tanh(gates) + post_bias
        i = a[:, 0 * H:1 * H]
        f = a[:, 1 * H:2 * H]
        g = a[:, 2 * H:3 * H]
        o = a[:, 3 * H:4 * H]
        c_new = f * c + i * g
        h_new = o * jnp.tanh(c_new)
        return h_new, c_new

    zeros = jnp.zeros((BB, H), jnp.float32)
    h1, c1, h2, c2 = zeros, zeros, zeros, zeros

    # T is a small static trip count: full unroll gives the LLO scheduler
    # cross-step / cross-layer visibility.
    for t in range(T):
        # Layer-1 recurrent half depends only on h2_{t-1}: issue it first so
        # it overlaps the layer-0 matmul + activations of the same step
        # (un-fused layer 1 => no in-loop lane concat).
        g1_rec = jnp.dot(h2, whh1, preferred_element_type=jnp.float32) + b1

        # Layer 0: precomputed x-projection + h1 @ W_hh0.
        g0 = gates_x[t * BB:(t + 1) * BB, :] + jnp.dot(
            h1, whh0, preferred_element_type=jnp.float32)
        h1, c1 = gate_act(g0, c1)

        # Layer 1: remaining (h1_t-dependent) half.
        g1 = g1_rec + jnp.dot(h1, wih1, preferred_element_type=jnp.float32)
        h2, c2 = gate_act(g1, c2)

    # Final FC + sigmoid.  For output_size == 1 an (BB,H)x(H,1) MXU matmul
    # wastes a full push/pop for H MACs: do it on the VPU + one lane reduce.
    if OUT == 1:
        logits = (jnp.sum(h2 * wfc_ref[...], axis=1, keepdims=True)
                  + bfc_ref[...])
    else:
        logits = (jnp.dot(h2, wfc_ref[...], preferred_element_type=jnp.float32)
                  + bfc_ref[...])
    out_ref[...] = 0.5 * jnp.tanh(0.5 * logits) + 0.5       # sigmoid(logits)


# ---------------------------------------------------------------------------
# One-time (per model) weight layout prep — hoisted out of the forward.
# ---------------------------------------------------------------------------
def prepare_kernel_params(params):
    H, out_size = params["w_fc"].shape
    # output_size == 1: pass the FC weight as a (1, H) row for the VPU reduce.
    w_fc = params["w_fc"].reshape(1, H) if out_size == 1 else params["w_fc"]
    return dict(
        w_ih0=params["w_ih0"], w_hh0=params["w_hh0"], b0=params["b0"],
        w_ih1=params["w_ih1"], w_hh1=params["w_hh1"], b1=params["b1"],
        w_fc=w_fc, b_fc=params["b_fc"],
    )


# ---------------------------------------------------------------------------
# Wrapper: per-call layout plumbing for x only (pad batch, block/time-major).
# ---------------------------------------------------------------------------
def lstm_model_forward(x_btd, kparams):
    """x_btd: (B, T, D) float32, batch_first like PyTorch.
    kparams: output of prepare_kernel_params().  Returns (B, output_size)."""
    B, T, D = x_btd.shape
    out_size = kparams["b_fc"].shape[-1]

    BB = 8                                    # batch rows per grid step
    nb = (B + BB - 1) // BB
    B_pad = nb * BB
    if B_pad != B:
        x_btd = jnp.pad(x_btd, ((0, B_pad - B), (0, 0), (0, 0)))

    # (B_pad, T, D) -> (nb, T*BB, D): block b holds original rows
    # [b*BB, b*BB+BB), time-major within the block (row t*BB + j).
    x_blk = (x_btd.reshape(nb, BB, T, D)
                  .transpose(0, 2, 1, 3)
                  .reshape(nb, T * BB, D))

    w_args = (kparams["w_ih0"], kparams["w_hh0"], kparams["b0"],
              kparams["w_ih1"], kparams["w_hh1"], kparams["b1"],
              kparams["w_fc"], kparams["b_fc"])

    def whole(a):
        nd = a.ndim
        return pl.BlockSpec(a.shape, lambda b, _nd=nd: (0,) * _nd)

    out = pl.pallas_call(
        lstm_kernel,
        out_shape=jax.ShapeDtypeStruct((B_pad, out_size), jnp.float32),
        grid=(nb,),
        in_specs=[pl.BlockSpec((1, T * BB, D), lambda b: (b, 0, 0))]
                 + [whole(a) for a in w_args],
        out_specs=pl.BlockSpec((BB, out_size), lambda b: (b, 0)),
        compiler_params=pltpu.CompilerParams(
            dimension_semantics=("parallel",),      # both TCs on v7x if nb > 1
            vmem_limit_bytes=32 * 1024 * 1024),
    )(x_blk, *w_args)
    return out[:B]


# ---------------------------------------------------------------------------
# Deterministic parameter construction (PyTorch-style U(-1/sqrt(H), 1/sqrt(H))).
# Weights are stored pre-transposed for (x @ W) MXU-friendly matmuls.
# ---------------------------------------------------------------------------
def init_params(key, input_size, hidden_size, output_size):
    k = 1.0 / jnp.sqrt(jnp.float32(hidden_size))
    keys = jax.random.split(key, 12)

    def u(kk, shape):
        return jax.random.uniform(kk, shape, jnp.float32, -k, k)

    H = hidden_size
    w_ih0 = u(keys[0], (input_size, 4 * H))
    w_hh0 = u(keys[1], (H, 4 * H))
    b0 = (u(keys[2], (4 * H,)) + u(keys[3], (4 * H,))).reshape(1, 4 * H)
    w_ih1 = u(keys[4], (H, 4 * H))
    w_hh1 = u(keys[5], (H, 4 * H))
    b1 = (u(keys[6], (4 * H,)) + u(keys[7], (4 * H,))).reshape(1, 4 * H)
    kf = 1.0 / jnp.sqrt(jnp.float32(H))
    w_fc = jax.random.uniform(keys[8], (H, output_size), jnp.float32, -kf, kf)
    b_fc = jax.random.uniform(keys[9], (1, output_size), jnp.float32, -kf, kf)

    return dict(w_ih0=w_ih0, w_hh0=w_hh0, b0=b0,
                w_ih1=w_ih1, w_hh1=w_hh1, b1=b1,
                w_fc=w_fc, b_fc=b_fc)


# Pure-JAX reference (same math as the PyTorch module) for a correctness check.
def reference_forward(x_btd, params):
    H = params["w_hh0"].shape[0]
    B, T, _ = x_btd.shape

    def cell(x_t, h, c, wih, whh, b):
        g = x_t @ wih + h @ whh + b
        i = jax.nn.sigmoid(g[:, 0 * H:1 * H])
        f = jax.nn.sigmoid(g[:, 1 * H:2 * H])
        gg = jnp.tanh(g[:, 2 * H:3 * H])
        o = jax.nn.sigmoid(g[:, 3 * H:4 * H])
        c = f * c + i * gg
        return o * jnp.tanh(c), c

    h1 = c1 = h2 = c2 = jnp.zeros((B, H), jnp.float32)
    for t in range(T):
        h1, c1 = cell(x_btd[:, t, :], h1, c1,
                      params["w_ih0"], params["w_hh0"], params["b0"])
        h2, c2 = cell(h1, h2, c2,
                      params["w_ih1"], params["w_hh1"], params["b1"])
    return jax.nn.sigmoid(h2 @ params["w_fc"] + params["b_fc"])


if __name__ == "__main__":
    B, T, D = 2, 8, 4          # batch, sequence length, input_size
    H, OUT = 32, 1             # hidden_size, output_size (num_layers = 2)

    key = jax.random.PRNGKey(0)
    kx, kp = jax.random.split(key)
    x = jax.random.normal(kx, (B, T, D), jnp.float32)
    params = init_params(kp, D, H, OUT)
    kparams = prepare_kernel_params(params)    # one-time layout prep

    out = lstm_model_forward(x, kparams)
    out = jax.block_until_ready(out)

    ref = reference_forward(x, params)
    assert out.shape == (B, OUT)
    # tanh-based sigmoid + un-fused accumulation shift results at ~1e-6 level.
    assert jnp.allclose(out, ref, atol=1e-4, rtol=1e-4), (out, ref)

    print("KERNEL_OK")
</pallas_src>

<mosaic_0001>
module attributes {stable_mosaic.version = 11 : i64} {
  func.func @lstm_kernel(%arg0: i32, %arg1: memref<1x64x4xf32, #tpu.memory_space<vmem>>, %arg2: memref<4x128xf32, #tpu.memory_space<vmem>>, %arg3: memref<32x128xf32, #tpu.memory_space<vmem>>, %arg4: memref<1x128xf32, #tpu.memory_space<vmem>>, %arg5: memref<32x128xf32, #tpu.memory_space<vmem>>, %arg6: memref<32x128xf32, #tpu.memory_space<vmem>>, %arg7: memref<1x128xf32, #tpu.memory_space<vmem>>, %arg8: memref<1x32xf32, #tpu.memory_space<vmem>>, %arg9: memref<1x1xf32, #tpu.memory_space<vmem>>, %arg10: memref<8x1xf32, #tpu.memory_space<vmem>>) attributes {dimension_semantics = [#tpu.dimension_semantics<parallel>], iteration_bounds = array<i64: 1>, scalar_prefetch = 0 : i64, scratch_operands = 0 : i64, tpu.core_type = #tpu.core_type<tc>, window_params = [{transform_indices = @transform_0, window_bounds = array<i64: 1, 64, 4>}, {pipeline_mode = #tpu.pipeline_mode<synchronous>, transform_indices = @transform_1, window_bounds = array<i64: 4, 128>}, {pipeline_mode = #tpu.pipeline_mode<synchronous>, transform_indices = @transform_2, window_bounds = array<i64: 32, 128>}, {pipeline_mode = #tpu.pipeline_mode<synchronous>, transform_indices = @transform_3, window_bounds = array<i64: 1, 128>}, {pipeline_mode = #tpu.pipeline_mode<synchronous>, transform_indices = @transform_4, window_bounds = array<i64: 32, 128>}, {pipeline_mode = #tpu.pipeline_mode<synchronous>, transform_indices = @transform_5, window_bounds = array<i64: 32, 128>}, {pipeline_mode = #tpu.pipeline_mode<synchronous>, transform_indices = @transform_6, window_bounds = array<i64: 1, 128>}, {pipeline_mode = #tpu.pipeline_mode<synchronous>, transform_indices = @transform_7, window_bounds = array<i64: 1, 32>}, {pipeline_mode = #tpu.pipeline_mode<synchronous>, transform_indices = @transform_8, window_bounds = array<i64: 1, 1>}, {transform_indices = @transform_9, window_bounds = array<i64: 8, 1>}]} {
    %0 = tpu.iota {dimensions = array<i32: 1>} : vector<1x128xi32>
    %c64_i32 = arith.constant 64 : i32
    %1 = vector.broadcast %c64_i32 : i32 to vector<1x128xi32>
    %2 = arith.cmpi sge, %0, %1 : vector<1x128xi32>
    %c96_i32 = arith.constant 96 : i32
    %3 = vector.broadcast %c96_i32 : i32 to vector<1x128xi32>
    %4 = arith.cmpi slt, %0, %3 : vector<1x128xi32>
    %5 = arith.andi %2, %4 : vector<1x128xi1>
    %cst = arith.constant 1.000000e+00 : f32
    %cst_0 = arith.constant 5.000000e-01 : f32
    %6 = vector.broadcast %cst : f32 to vector<1x128xf32>
    %7 = vector.broadcast %cst_0 : f32 to vector<1x128xf32>
    %8 = arith.select %5, %6, %7 : vector<1x128xi1>, vector<1x128xf32>
    %cst_1 = arith.constant 0.000000e+00 : f32
    %cst_2 = arith.constant 5.000000e-01 : f32
    %9 = vector.broadcast %cst_1 : f32 to vector<1x128xf32>
    %10 = vector.broadcast %cst_2 : f32 to vector<1x128xf32>
    %11 = arith.select %5, %9, %10 : vector<1x128xi1>, vector<1x128xf32>
    %c0 = arith.constant 0 : index
    %c0_3 = arith.constant 0 : index
    %12 = vector.load %arg2[%c0, %c0_3] : memref<4x128xf32, #tpu.memory_space<vmem>>, vector<4x128xf32>
    %13 = vector.broadcast %8 : vector<1x128xf32> to vector<4x128xf32>
    %14 = arith.mulf %12, %13 : vector<4x128xf32>
    %c0_4 = arith.constant 0 : index
    %c0_5 = arith.constant 0 : index
    %15 = vector.load %arg3[%c0_4, %c0_5] : memref<32x128xf32, #tpu.memory_space<vmem>>, vector<32x128xf32>
    %16 = vector.broadcast %8 : vector<1x128xf32> to vector<32x128xf32>
    %17 = arith.mulf %15, %16 : vector<32x128xf32>
    %c0_6 = arith.constant 0 : index
    %c0_7 = arith.constant 0 : index
    %18 = vector.load %arg5[%c0_6, %c0_7] : memref<32x128xf32, #tpu.memory_space<vmem>>, vector<32x128xf32>
    %19 = vector.broadcast %8 : vector<1x128xf32> to vector<32x128xf32>
    %20 = arith.mulf %18, %19 : vector<32x128xf32>
    %c0_8 = arith.constant 0 : index
    %c0_9 = arith.constant 0 : index
    %21 = vector.load %arg6[%c0_8, %c0_9] : memref<32x128xf32, #tpu.memory_space<vmem>>, vector<32x128xf32>
    %22 = vector.broadcast %8 : vector<1x128xf32> to vector<32x128xf32>
    %23 = arith.mulf %21, %22 : vector<32x128xf32>
    %c0_10 = arith.constant 0 : index
    %c0_11 = arith.constant 0 : index
    %c0_12 = arith.constant 0 : index
    %24 = vector.load %arg1[%c0_10, %c0_11, %c0_12] : memref<1x64x4xf32, #tpu.memory_space<vmem>>, vector<1x64x4xf32>
    %25 = vector.shape_cast %24 : vector<1x64x4xf32> to vector<64x4xf32>
    %cst_13 = arith.constant dense<0.000000e+00> : vector<64x128xf32>
    %26 = tpu.matmul %25, %14, %cst_13 {dimension_numbers = #tpu.dot_dimension_numbers<[1], [0], [0], [1], [0, 0, 1, 1], [], []>} : vector<64x4xf32>, vector<4x128xf32>, vector<64x128xf32> -> vector<64x128xf32>
    %c0_14 = arith.constant 0 : index
    %c0_15 = arith.constant 0 : index
    %27 = vector.load %arg4[%c0_14, %c0_15] : memref<1x128xf32, #tpu.memory_space<vmem>>, vector<1x128xf32>
    %28 = arith.mulf %27, %8 : vector<1x128xf32>
    %29 = vector.broadcast %28 : vector<1x128xf32> to vector<64x128xf32>
    %30 = arith.addf %26, %29 : vector<64x128xf32>
    %c0_16 = arith.constant 0 : index
    %c0_17 = arith.constant 0 : index
    %31 = vector.load %arg7[%c0_16, %c0_17] : memref<1x128xf32, #tpu.memory_space<vmem>>, vector<1x128xf32>
    %32 = arith.mulf %31, %8 : vector<1x128xf32>
    %33 = vector.shape_cast %32 : vector<1x128xf32> to vector<1x128xf32>
    %34 = vector.broadcast %33 : vector<1x128xf32> to vector<8x128xf32>
    %cst_18 = arith.constant 0.000000e+00 : f32
    %35 = vector.broadcast %cst_18 : f32 to vector<8x32xf32>
    %cst_19 = arith.constant dense<0.000000e+00> : vector<8x128xf32>
    %36 = tpu.matmul %35, %23, %cst_19 {dimension_numbers = #tpu.dot_dimension_numbers<[1], [0], [0], [1], [0, 0, 1, 1], [], []>} : vector<8x32xf32>, vector<32x128xf32>, vector<8x128xf32> -> vector<8x128xf32>
    %37 = arith.addf %36, %34 : vector<8x128xf32>
    %38 = vector.extract_strided_slice %30 {offsets = [0, 0], sizes = [8, 128], strides = [1, 1]} : vector<64x128xf32> to vector<8x128xf32>
    %cst_20 = arith.constant dense<0.000000e+00> : vector<8x128xf32>
    %39 = tpu.matmul %35, %17, %cst_20 {dimension_numbers = #tpu.dot_dimension_numbers<[1], [0], [0], [1], [0, 0, 1, 1], [], []>} : vector<8x32xf32>, vector<32x128xf32>, vector<8x128xf32> -> vector<8x128xf32>
    %40 = arith.addf %38, %39 : vector<8x128xf32>
    %41 = math.tanh %40 : vector<8x128xf32>
    %42 = vector.broadcast %8 : vector<1x128xf32> to vector<8x128xf32>
    %43 = arith.mulf %42, %41 : vector<8x128xf32>
    %44 = vector.broadcast %11 : vector<1x128xf32> to vector<8x128xf32>
    %45 = arith.addf %43, %44 : vector<8x128xf32>
    %46 = vector.extract_strided_slice %45 {offsets = [0, 0], sizes = [8, 32], strides = [1, 1]} : vector<8x128xf32> to vector<8x32xf32>
    %47 = vector.extract_strided_slice %45 {offsets = [0, 32], sizes = [8, 32], strides = [1, 1]} : vector<8x128xf32> to vector<8x32xf32>
    %48 = vector.extract_strided_slice %45 {offsets = [0, 64], sizes = [8, 32], strides = [1, 1]} : vector<8x128xf32> to vector<8x32xf32>
    %49 = vector.extract_strided_slice %45 {offsets = [0, 96], sizes = [8, 32], strides = [1, 1]} : vector<8x128xf32> to vector<8x32xf32>
    %50 = arith.mulf %47, %35 : vector<8x32xf32>
    %51 = arith.mulf %46, %48 : vector<8x32xf32>
    %52 = arith.addf %50, %51 : vector<8x32xf32>
    %53 = math.tanh %52 : vector<8x32xf32>
    %54 = arith.mulf %49, %53 : vector<8x32xf32>
    %cst_21 = arith.constant dense<0.000000e+00> : vector<8x128xf32>
    %55 = tpu.matmul %54, %20, %cst_21 {dimension_numbers = #tpu.dot_dimension_numbers<[1], [0], [0], [1], [0, 0, 1, 1], [], []>} : vector<8x32xf32>, vector<32x128xf32>, vector<8x128xf32> -> vector<8x128xf32>
    %56 = arith.addf %37, %55 : vector<8x128xf32>
    %57 = math.tanh %56 : vector<8x128xf32>
    %58 = vector.broadcast %8 : vector<1x128xf32> to vector<8x128xf32>
    %59 = arith.mulf %58, %57 : vector<8x128xf32>
    %60 = vector.broadcast %11 : vector<1x128xf32> to vector<8x128xf32>
    %61 = arith.addf %59, %60 : vector<8x128xf32>
    %62 = vector.extract_strided_slice %61 {offsets = [0, 0], sizes = [8, 32], strides = [1, 1]} : vector<8x128xf32> to vector<8x32xf32>
    %63 = vector.extract_strided_slice %61 {offsets = [0, 32], sizes = [8, 32], strides = [1, 1]} : vector<8x128xf32> to vector<8x32xf32>
    %64 = vector.extract_strided_slice %61 {offsets = [0, 64], sizes = [8, 32], strides = [1, 1]} : vector<8x128xf32> to vector<8x32xf32>
    %65 = vector.extract_strided_slice %61 {offsets = [0, 96], sizes = [8, 32], strides = [1, 1]} : vector<8x128xf32> to vector<8x32xf32>
    %66 = arith.mulf %63, %35 : vector<8x32xf32>
    %67 = arith.mulf %62, %64 : vector<8x32xf32>
    %68 = arith.addf %66, %67 : vector<8x32xf32>
    %69 = math.tanh %68 : vector<8x32xf32>
    %70 = arith.mulf %65, %69 : vector<8x32xf32>
    %cst_22 = arith.constant dense<0.000000e+00> : vector<8x128xf32>
    %71 = tpu.matmul %70, %23, %cst_22 {dimension_numbers = #tpu.dot_dimension_numbers<[1], [0], [0], [1], [0, 0, 1, 1], [], []>} : vector<8x32xf32>, vector<32x128xf32>, vector<8x128xf32> -> vector<8x128xf32>
    %72 = arith.addf %71, %34 : vector<8x128xf32>
    %73 = vector.extract_strided_slice %30 {offsets = [8, 0], sizes = [8, 128], strides = [1, 1]} : vector<64x128xf32> to vector<8x128xf32>
    %cst_23 = arith.constant dense<0.000000e+00> : vector<8x128xf32>
    %74 = tpu.matmul %54, %17, %cst_23 {dimension_numbers = #tpu.dot_dimension_numbers<[1], [0], [0], [1], [0, 0, 1, 1], [], []>} : vector<8x32xf32>, vector<32x128xf32>, vector<8x128xf32> -> vector<8x128xf32>
    %75 = arith.addf %73, %74 : vector<8x128xf32>
    %76 = math.tanh %75 : vector<8x128xf32>
    %77 = vector.broadcast %8 : vector<1x128xf32> to vector<8x128xf32>
    %78 = arith.mulf %77, %76 : vector<8x128xf32>
    %79 = vector.broadcast %11 : vector<1x128xf32> to vector<8x128xf32>
    %80 = arith.addf %78, %79 : vector<8x128xf32>
    %81 = vector.extract_strided_slice %80 {offsets = [0, 0], sizes = [8, 32], strides = [1, 1]} : vector<8x128xf32> to vector<8x32xf32>
    %82 = vector.extract_strided_slice %80 {offsets = [0, 32], sizes = [8, 32], strides = [1, 1]} : vector<8x128xf32> to vector<8x32xf32>
    %83 = vector.extract_strided_slice %80 {offsets = [0, 64], sizes = [8, 32], strides = [1, 1]} : vector<8x128xf32> to vector<8x32xf32>
    %84 = vector.extract_strided_slice %80 {offsets = [0, 96], sizes = [8, 32], strides = [1, 1]} : vector<8x128xf32> to vector<8x32xf32>
    %85 = arith.mulf %82, %52 : vector<8x32xf32>
    %86 = arith.mulf %81, %83 : vector<8x32xf32>
    %87 = arith.addf %85, %86 : vector<8x32xf32>
    %88 = math.tanh %87 : vector<8x32xf32>
    %89 = arith.mulf %84, %88 : vector<8x32xf32>
    %cst_24 = arith.constant dense<0.000000e+00> : vector<8x128xf32>
    %90 = tpu.matmul %89, %20, %cst_24 {dimension_numbers = #tpu.dot_dimension_numbers<[1], [0], [0], [1], [0, 0, 1, 1], [], []>} : vector<8x32xf32>, vector<32x128xf32>, vector<8x128xf32> -> vector<8x128xf32>
    %91 = arith.addf %72, %90 : vector<8x128xf32>
    %92 = math.tanh %91 : vector<8x128xf32>
    %93 = vector.broadcast %8 : vector<1x128xf32> to vector<8x128xf32>
    %94 = arith.mulf %93, %92 : vector<8x128xf32>
    %95 = vector.broadcast %11 : vector<1x128xf32> to vector<8x128xf32>
    %96 = arith.addf %94, %95 : vector<8x128xf32>
    %97 = vector.extract_strided_slice %96 {offsets = [0, 0], sizes = [8, 32], strides = [1, 1]} : vector<8x128xf32> to vector<8x32xf32>
    %98 = vector.extract_strided_slice %96 {offsets = [0, 32], sizes = [8, 32], strides = [1, 1]} : vector<8x128xf32> to vector<8x32xf32>
    %99 = vector.extract_strided_slice %96 {offsets = [0, 64], sizes = [8, 32], strides = [1, 1]} : vector<8x128xf32> to vector<8x32xf32>
    %100 = vector.extract_strided_slice %96 {offsets = [0, 96], sizes = [8, 32], strides = [1, 1]} : vector<8x128xf32> to vector<8x32xf32>
    %101 = arith.mulf %98, %68 : vector<8x32xf32>
    %102 = arith.mulf %97, %99 : vector<8x32xf32>
    %103 = arith.addf %101, %102 : vector<8x32xf32>
    %104 = math.tanh %103 : vector<8x32xf32>
    %105 = arith.mulf %100, %104 : vector<8x32xf32>
    %cst_25 = arith.constant dense<0.000000e+00> : vector<8x128xf32>
    %106 = tpu.matmul %105, %23, %cst_25 {dimension_numbers = #tpu.dot_dimension_numbers<[1], [0], [0], [1], [0, 0, 1, 1], [], []>} : vector<8x32xf32>, vector<32x128xf32>, vector<8x128xf32> -> vector<8x128xf32>
    %107 = arith.addf %106, %34 : vector<8x128xf32>
    %108 = vector.extract_strided_slice %30 {offsets = [16, 0], sizes = [8, 128], strides = [1, 1]} : vector<64x128xf32> to vector<8x128xf32>
    %cst_26 = arith.constant dense<0.000000e+00> : vector<8x128xf32>
    %109 = tpu.matmul %89, %17, %cst_26 {dimension_numbers = #tpu.dot_dimension_numbers<[1], [0], [0], [1], [0, 0, 1, 1], [], []>} : vector<8x32xf32>, vector<32x128xf32>, vector<8x128xf32> -> vector<8x128xf32>
    %110 = arith.addf %108, %109 : vector<8x128xf32>
    %111 = math.tanh %110 : vector<8x128xf32>
    %112 = vector.broadcast %8 : vector<1x128xf32> to vector<8x128xf32>
    %113 = arith.mulf %112, %111 : vector<8x128xf32>
    %114 = vector.broadcast %11 : vector<1x128xf32> to vector<8x128xf32>
    %115 = arith.addf %113, %114 : vector<8x128xf32>
    %116 = vector.extract_strided_slice %115 {offsets = [0, 0], sizes = [8, 32], strides = [1, 1]} : vector<8x128xf32> to vector<8x32xf32>
    %117 = vector.extract_strided_slice %115 {offsets = [0, 32], sizes = [8, 32], strides = [1, 1]} : vector<8x128xf32> to vector<8x32xf32>
    %118 = vector.extract_strided_slice %115 {offsets = [0, 64], sizes = [8, 32], strides = [1, 1]} : vector<8x128xf32> to vector<8x32xf32>
    %119 = vector.extract_strided_slice %115 {offsets = [0, 96], sizes = [8, 32], strides = [1, 1]} : vector<8x128xf32> to vector<8x32xf32>
    %120 = arith.mulf %117, %87 : vector<8x32xf32>
    %121 = arith.mulf %116, %118 : vector<8x32xf32>
    %122 = arith.addf %120, %121 : vector<8x32xf32>
    %123 = math.tanh %122 : vector<8x32xf32>
    %124 = arith.mulf %119, %123 : vector<8x32xf32>
    %cst_27 = arith.constant dense<0.000000e+00> : vector<8x128xf32>
    %125 = tpu.matmul %124, %20, %cst_27 {dimension_numbers = #tpu.dot_dimension_numbers<[1], [0], [0], [1], [0, 0, 1, 1], [], []>} : vector<8x32xf32>, vector<32x128xf32>, vector<8x128xf32> -> vector<8x128xf32>
    %126 = arith.addf %107, %125 : vector<8x128xf32>
    %127 = math.tanh %126 : vector<8x128xf32>
    %128 = vector.broadcast %8 : vector<1x128xf32> to vector<8x128xf32>
    %129 = arith.mulf %128, %127 : vector<8x128xf32>
    %130 = vector.broadcast %11 : vector<1x128xf32> to vector<8x128xf32>
    %131 = arith.addf %129, %130 : vector<8x128xf32>
    %132 = vector.extract_strided_slice %131 {offsets = [0, 0], sizes = [8, 32], strides = [1, 1]} : vector<8x128xf32> to vector<8x32xf32>
    %133 = vector.extract_strided_slice %131 {offsets = [0, 32], sizes = [8, 32], strides = [1, 1]} : vector<8x128xf32> to vector<8x32xf32>
    %134 = vector.extract_strided_slice %131 {offsets = [0, 64], sizes = [8, 32], strides = [1, 1]} : vector<8x128xf32> to vector<8x32xf32>
    %135 = vector.extract_strided_slice %131 {offsets = [0, 96], sizes = [8, 32], strides = [1, 1]} : vector<8x128xf32> to vector<8x32xf32>
    %136 = arith.mulf %133, %103 : vector<8x32xf32>
    %137 = arith.mulf %132, %134 : vector<8x32xf32>
    %138 = arith.addf %136, %137 : vector<8x32xf32>
    %139 = math.tanh %138 : vector<8x32xf32>
    %140 = arith.mulf %135, %139 : vector<8x32xf32>
    %cst_28 = arith.constant dense<0.000000e+00> : vector<8x128xf32>
    %141 = tpu.matmul %140, %23, %cst_28 {dimension_numbers = #tpu.dot_dimension_numbers<[1], [0], [0], [1], [0, 0, 1, 1], [], []>} : vector<8x32xf32>, vector<32x128xf32>, vector<8x128xf32> -> vector<8x128xf32>
    %142 = arith.addf %141, %34 : vector<8x128xf32>
    %143 = vector.extract_strided_slice %30 {offsets = [24, 0], sizes = [8, 128], strides = [1, 1]} : vector<64x128xf32> to vector<8x128xf32>
    %cst_29 = arith.constant dense<0.000000e+00> : vector<8x128xf32>
    %144 = tpu.matmul %124, %17, %cst_29 {dimension_numbers = #tpu.dot_dimension_numbers<[1], [0], [0], [1], [0, 0, 1, 1], [], []>} : vector<8x32xf32>, vector<32x128xf32>, vector<8x128xf32> -> vector<8x128xf32>
    %145 = arith.addf %143, %144 : vector<8x128xf32>
    %146 = math.tanh %145 : vector<8x128xf32>
    %147 = vector.broadcast %8 : vector<1x128xf32> to vector<8x128xf32>
    %148 = arith.mulf %147, %146 : vector<8x128xf32>
    %149 = vector.broadcast %11 : vector<1x128xf32> to vector<8x128xf32>
    %150 = arith.addf %148, %149 : vector<8x128xf32>
    %151 = vector.extract_strided_slice %150 {offsets = [0, 0], sizes = [8, 32], strides = [1, 1]} : vector<8x128xf32> to vector<8x32xf32>
    %152 = vector.extract_strided_slice %150 {offsets = [0, 32], sizes = [8, 32], strides = [1, 1]} : vector<8x128xf32> to vector<8x32xf32>
    %153 = vector.extract_strided_slice %150 {offsets = [0, 64], sizes = [8, 32], strides = [1, 1]} : vector<8x128xf32> to vector<8x32xf32>
    %154 = vector.extract_strided_slice %150 {offsets = [0, 96], sizes = [8, 32], strides = [1, 1]} : vector<8x128xf32> to vector<8x32xf32>
    %155 = arith.mulf %152, %122 : vector<8x32xf32>
    %156 = arith.mulf %151, %153 : vector<8x32xf32>
    %157 = arith.addf %155, %156 : vector<8x32xf32>
    %158 = math.tanh %157 : vector<8x32xf32>
    %159 = arith.mulf %154, %158 : vector<8x32xf32>
    %cst_30 = arith.constant dense<0.000000e+00> : vector<8x128xf32>
    %160 = tpu.matmul %159, %20, %cst_30 {dimension_numbers = #tpu.dot_dimension_numbers<[1], [0], [0], [1], [0, 0, 1, 1], [], []>} : vector<8x32xf32>, vector<32x128xf32>, vector<8x128xf32> -> vector<8x128xf32>
    %161 = arith.addf %142, %160 : vector<8x128xf32>
    %162 = math.tanh %161 : vector<8x128xf32>
    %163 = vector.broadcast %8 : vector<1x128xf32> to vector<8x128xf32>
    %164 = arith.mulf %163, %162 : vector<8x128xf32>
    %165 = vector.broadcast %11 : vector<1x128xf32> to vector<8x128xf32>
    %166 = arith.addf %164, %165 : vector<8x128xf32>
    %167 = vector.extract_strided_slice %166 {offsets = [0, 0], sizes = [8, 32], strides = [1, 1]} : vector<8x128xf32> to vector<8x32xf32>
    %168 = vector.extract_strided_slice %166 {offsets = [0, 32], sizes = [8, 32], strides = [1, 1]} : vector<8x128xf32> to vector<8x32xf32>
    %169 = vector.extract_strided_slice %166 {offsets = [0, 64], sizes = [8, 32], strides = [1, 1]} : vector<8x128xf32> to vector<8x32xf32>
    %170 = vector.extract_strided_slice %166 {offsets = [0, 96], sizes = [8, 32], strides = [1, 1]} : vector<8x128xf32> to vector<8x32xf32>
    %171 = arith.mulf %168, %138 : vector<8x32xf32>
    %172 = arith.mulf %167, %169 : vector<8x32xf32>
    %173 = arith.addf %171, %172 : vector<8x32xf32>
    %174 = math.tanh %173 : vector<8x32xf32>
    %175 = arith.mulf %170, %174 : vector<8x32xf32>
    %cst_31 = arith.constant dense<0.000000e+00> : vector<8x128xf32>
    %176 = tpu.matmul %175, %23, %cst_31 {dimension_numbers = #tpu.dot_dimension_numbers<[1], [0], [0], [1], [0, 0, 1, 1], [], []>} : vector<8x32xf32>, vector<32x128xf32>, vector<8x128xf32> -> vector<8x128xf32>
    %177 = arith.addf %176, %34 : vector<8x128xf32>
    %178 = vector.extract_strided_slice %30 {offsets = [32, 0], sizes = [8, 128], strides = [1, 1]} : vector<64x128xf32> to vector<8x128xf32>
    %cst_32 = arith.constant dense<0.000000e+00> : vector<8x128xf32>
    %179 = tpu.matmul %159, %17, %cst_32 {dimension_numbers = #tpu.dot_dimension_numbers<[1], [0], [0], [1], [0, 0, 1, 1], [], []>} : vector<8x32xf32>, vector<32x128xf32>, vector<8x128xf32> -> vector<8x128xf32>
    %180 = arith.addf %178, %179 : vector<8x128xf32>
    %181 = math.tanh %180 : vector<8x128xf32>
    %182 = vector.broadcast %8 : vector<1x128xf32> to vector<8x128xf32>
    %183 = arith.mulf %182, %181 : vector<8x128xf32>
    %184 = vector.broadcast %11 : vector<1x128xf32> to vector<8x128xf32>
    %185 = arith.addf %183, %184 : vector<8x128xf32>
    %186 = vector.extract_strided_slice %185 {offsets = [0, 0], sizes = [8, 32], strides = [1, 1]} : vector<8x128xf32> to vector<8x32xf32>
    %187 = vector.extract_strided_slice %185 {offsets = [0, 32], sizes = [8, 32], strides = [1, 1]} : vector<8x128xf32> to vector<8x32xf32>
    %188 = vector.extract_strided_slice %185 {offsets = [0, 64], sizes = [8, 32], strides = [1, 1]} : vector<8x128xf32> to vector<8x32xf32>
    %189 = vector.extract_strided_slice %185 {offsets = [0, 96], sizes = [8, 32], strides = [1, 1]} : vector<8x128xf32> to vector<8x32xf32>
    %190 = arith.mulf %187, %157 : vector<8x32xf32>
    %191 = arith.mulf %186, %188 : vector<8x32xf32>
    %192 = arith.addf %190, %191 : vector<8x32xf32>
    %193 = math.tanh %192 : vector<8x32xf32>
    %194 = arith.mulf %189, %193 : vector<8x32xf32>
    %cst_33 = arith.constant dense<0.000000e+00> : vector<8x128xf32>
    %195 = tpu.matmul %194, %20, %cst_33 {dimension_numbers = #tpu.dot_dimension_numbers<[1], [0], [0], [1], [0, 0, 1, 1], [], []>} : vector<8x32xf32>, vector<32x128xf32>, vector<8x128xf32> -> vector<8x128xf32>
    %196 = arith.addf %177, %195 : vector<8x128xf32>
    %197 = math.tanh %196 : vector<8x128xf32>
    %198 = vector.broadcast %8 : vector<1x128xf32> to vector<8x128xf32>
    %199 = arith.mulf %198, %197 : vector<8x128xf32>
    %200 = vector.broadcast %11 : vector<1x128xf32> to vector<8x128xf32>
    %201 = arith.addf %199, %200 : vector<8x128xf32>
    %202 = vector.extract_strided_slice %201 {offsets = [0, 0], sizes = [8, 32], strides = [1, 1]} : vector<8x128xf32> to vector<8x32xf32>
    %203 = vector.extract_strided_slice %201 {offsets = [0, 32], sizes = [8, 32], strides = [1, 1]} : vector<8x128xf32> to vector<8x32xf32>
    %204 = vector.extract_strided_slice %201 {offsets = [0, 64], sizes = [8, 32], strides = [1, 1]} : vector<8x128xf32> to vector<8x32xf32>
    %205 = vector.extract_strided_slice %201 {offsets = [0, 96], sizes = [8, 32], strides = [1, 1]} : vector<8x128xf32> to vector<8x32xf32>
    %206 = arith.mulf %203, %173 : vector<8x32xf32>
    %207 = arith.mulf %202, %204 : vector<8x32xf32>
    %208 = arith.addf %206, %207 : vector<8x32xf32>
    %209 = math.tanh %208 : vector<8x32xf32>
    %210 = arith.mulf %205, %209 : vector<8x32xf32>
    %cst_34 = arith.constant dense<0.000000e+00> : vector<8x128xf32>
    %211 = tpu.matmul %210, %23, %cst_34 {dimension_numbers = #tpu.dot_dimension_numbers<[1], [0], [0], [1], [0, 0, 1, 1], [], []>} : vector<8x32xf32>, vector<32x128xf32>, vector<8x128xf32> -> vector<8x128xf32>
    %212 = arith.addf %211, %34 : vector<8x128xf32>
    %213 = vector.extract_strided_slice %30 {offsets = [40, 0], sizes = [8, 128], strides = [1, 1]} : vector<64x128xf32> to vector<8x128xf32>
    %cst_35 = arith.constant dense<0.000000e+00> : vector<8x128xf32>
    %214 = tpu.matmul %194, %17, %cst_35 {dimension_numbers = #tpu.dot_dimension_numbers<[1], [0], [0], [1], [0, 0, 1, 1], [], []>} : vector<8x32xf32>, vector<32x128xf32>, vector<8x128xf32> -> vector<8x128xf32>
    %215 = arith.addf %213, %214 : vector<8x128xf32>
    %216 = math.tanh %215 : vector<8x128xf32>
    %217 = vector.broadcast %8 : vector<1x128xf32> to vector<8x128xf32>
    %218 = arith.mulf %217, %216 : vector<8x128xf32>
    %219 = vector.broadcast %11 : vector<1x128xf32> to vector<8x128xf32>
    %220 = arith.addf %218, %219 : vector<8x128xf32>
    %221 = vector.extract_strided_slice %220 {offsets = [0, 0], sizes = [8, 32], strides = [1, 1]} : vector<8x128xf32> to vector<8x32xf32>
    %222 = vector.extract_strided_slice %220 {offsets = [0, 32], sizes = [8, 32], strides = [1, 1]} : vector<8x128xf32> to vector<8x32xf32>
    %223 = vector.extract_strided_slice %220 {offsets = [0, 64], sizes = [8, 32], strides = [1, 1]} : vector<8x128xf32> to vector<8x32xf32>
    %224 = vector.extract_strided_slice %220 {offsets = [0, 96], sizes = [8, 32], strides = [1, 1]} : vector<8x128xf32> to vector<8x32xf32>
    %225 = arith.mulf %222, %192 : vector<8x32xf32>
    %226 = arith.mulf %221, %223 : vector<8x32xf32>
    %227 = arith.addf %225, %226 : vector<8x32xf32>
    %228 = math.tanh %227 : vector<8x32xf32>
    %229 = arith.mulf %224, %228 : vector<8x32xf32>
    %cst_36 = arith.constant dense<0.000000e+00> : vector<8x128xf32>
    %230 = tpu.matmul %229, %20, %cst_36 {dimension_numbers = #tpu.dot_dimension_numbers<[1], [0], [0], [1], [0, 0, 1, 1], [], []>} : vector<8x32xf32>, vector<32x128xf32>, vector<8x128xf32> -> vector<8x128xf32>
    %231 = arith.addf %212, %230 : vector<8x128xf32>
    %232 = math.tanh %231 : vector<8x128xf32>
    %233 = vector.broadcast %8 : vector<1x128xf32> to vector<8x128xf32>
    %234 = arith.mulf %233, %232 : vector<8x128xf32>
    %235 = vector.broadcast %11 : vector<1x128xf32> to vector<8x128xf32>
    %236 = arith.addf %234, %235 : vector<8x128xf32>
    %237 = vector.extract_strided_slice %236 {offsets = [0, 0], sizes = [8, 32], strides = [1, 1]} : vector<8x128xf32> to vector<8x32xf32>
    %238 = vector.extract_strided_slice %236 {offsets = [0, 32], sizes = [8, 32], strides = [1, 1]} : vector<8x128xf32> to vector<8x32xf32>
    %239 = vector.extract_strided_slice %236 {offsets = [0, 64], sizes = [8, 32], strides = [1, 1]} : vector<8x128xf32> to vector<8x32xf32>
    %240 = vector.extract_strided_slice %236 {offsets = [0, 96], sizes = [8, 32], strides = [1, 1]} : vector<8x128xf32> to vector<8x32xf32>
    %241 = arith.mulf %238, %208 : vector<8x32xf32>
    %242 = arith.mulf %237, %239 : vector<8x32xf32>
    %243 = arith.addf %241, %242 : vector<8x32xf32>
    %244 = math.tanh %243 : vector<8x32xf32>
    %245 = arith.mulf %240, %244 : vector<8x32xf32>
    %cst_37 = arith.constant dense<0.000000e+00> : vector<8x128xf32>
    %246 = tpu.matmul %245, %23, %cst_37 {dimension_numbers = #tpu.dot_dimension_numbers<[1], [0], [0], [1], [0, 0, 1, 1], [], []>} : vector<8x32xf32>, vector<32x128xf32>, vector<8x128xf32> -> vector<8x128xf32>
    %247 = arith.addf %246, %34 : vector<8x128xf32>
    %248 = vector.extract_strided_slice %30 {offsets = [48, 0], sizes = [8, 128], strides = [1, 1]} : vector<64x128xf32> to vector<8x128xf32>
    %cst_38 = arith.constant dense<0.000000e+00> : vector<8x128xf32>
    %249 = tpu.matmul %229, %17, %cst_38 {dimension_numbers = #tpu.dot_dimension_numbers<[1], [0], [0], [1], [0, 0, 1, 1], [], []>} : vector<8x32xf32>, vector<32x128xf32>, vector<8x128xf32> -> vector<8x128xf32>
    %250 = arith.addf %248, %249 : vector<8x128xf32>
    %251 = math.tanh %250 : vector<8x128xf32>
    %252 = vector.broadcast %8 : vector<1x128xf32> to vector<8x128xf32>
    %253 = arith.mulf %252, %251 : vector<8x128xf32>
    %254 = vector.broadcast %11 : vector<1x128xf32> to vector<8x128xf32>
    %255 = arith.addf %253, %254 : vector<8x128xf32>
    %256 = vector.extract_strided_slice %255 {offsets = [0, 0], sizes = [8, 32], strides = [1, 1]} : vector<8x128xf32> to vector<8x32xf32>
    %257 = vector.extract_strided_slice %255 {offsets = [0, 32], sizes = [8, 32], strides = [1, 1]} : vector<8x128xf32> to vector<8x32xf32>
    %258 = vector.extract_strided_slice %255 {offsets = [0, 64], sizes = [8, 32], strides = [1, 1]} : vector<8x128xf32> to vector<8x32xf32>
    %259 = vector.extract_strided_slice %255 {offsets = [0, 96], sizes = [8, 32], strides = [1, 1]} : vector<8x128xf32> to vector<8x32xf32>
    %260 = arith.mulf %257, %227 : vector<8x32xf32>
    %261 = arith.mulf %256, %258 : vector<8x32xf32>
    %262 = arith.addf %260, %261 : vector<8x32xf32>
    %263 = math.tanh %262 : vector<8x32xf32>
    %264 = arith.mulf %259, %263 : vector<8x32xf32>
    %cst_39 = arith.constant dense<0.000000e+00> : vector<8x128xf32>
    %265 = tpu.matmul %264, %20, %cst_39 {dimension_numbers = #tpu.dot_dimension_numbers<[1], [0], [0], [1], [0, 0, 1, 1], [], []>} : vector<8x32xf32>, vector<32x128xf32>, vector<8x128xf32> -> vector<8x128xf32>
    %266 = arith.addf %247, %265 : vector<8x128xf32>
    %267 = math.tanh %266 : vector<8x128xf32>
    %268 = vector.broadcast %8 : vector<1x128xf32> to vector<8x128xf32>
    %269 = arith.mulf %268, %267 : vector<8x128xf32>
    %270 = vector.broadcast %11 : vector<1x128xf32> to vector<8x128xf32>
    %271 = arith.addf %269, %270 : vector<8x128xf32>
    %272 = vector.extract_strided_slice %271 {offsets = [0, 0], sizes = [8, 32], strides = [1, 1]} : vector<8x128xf32> to vector<8x32xf32>
    %273 = vector.extract_strided_slice %271 {offsets = [0, 32], sizes = [8, 32], strides = [1, 1]} : vector<8x128xf32> to vector<8x32xf32>
    %274 = vector.extract_strided_slice %271 {offsets = [0, 64], sizes = [8, 32], strides = [1, 1]} : vector<8x128xf32> to vector<8x32xf32>
    %275 = vector.extract_strided_slice %271 {offsets = [0, 96], sizes = [8, 32], strides = [1, 1]} : vector<8x128xf32> to vector<8x32xf32>
    %276 = arith.mulf %273, %243 : vector<8x32xf32>
    %277 = arith.mulf %272, %274 : vector<8x32xf32>
    %278 = arith.addf %276, %277 : vector<8x32xf32>
    %279 = math.tanh %278 : vector<8x32xf32>
    %280 = arith.mulf %275, %279 : vector<8x32xf32>
    %cst_40 = arith.constant dense<0.000000e+00> : vector<8x128xf32>
    %281 = tpu.matmul %280, %23, %cst_40 {dimension_numbers = #tpu.dot_dimension_numbers<[1], [0], [0], [1], [0, 0, 1, 1], [], []>} : vector<8x32xf32>, vector<32x128xf32>, vector<8x128xf32> -> vector<8x128xf32>
    %282 = arith.addf %281, %34 : vector<8x128xf32>
    %283 = vector.extract_strided_slice %30 {offsets = [56, 0], sizes = [8, 128], strides = [1, 1]} : vector<64x128xf32> to vector<8x128xf32>
    %cst_41 = arith.constant dense<0.000000e+00> : vector<8x128xf32>
    %284 = tpu.matmul %264, %17, %cst_41 {dimension_numbers = #tpu.dot_dimension_numbers<[1], [0], [0], [1], [0, 0, 1, 1], [], []>} : vector<8x32xf32>, vector<32x128xf32>, vector<8x128xf32> -> vector<8x128xf32>
    %285 = arith.addf %283, %284 : vector<8x128xf32>
    %286 = math.tanh %285 : vector<8x128xf32>
    %287 = vector.broadcast %8 : vector<1x128xf32> to vector<8x128xf32>
    %288 = arith.mulf %287, %286 : vector<8x128xf32>
    %289 = vector.broadcast %11 : vector<1x128xf32> to vector<8x128xf32>
    %290 = arith.addf %288, %289 : vector<8x128xf32>
    %291 = vector.extract_strided_slice %290 {offsets = [0, 0], sizes = [8, 32], strides = [1, 1]} : vector<8x128xf32> to vector<8x32xf32>
    %292 = vector.extract_strided_slice %290 {offsets = [0, 32], sizes = [8, 32], strides = [1, 1]} : vector<8x128xf32> to vector<8x32xf32>
    %293 = vector.extract_strided_slice %290 {offsets = [0, 64], sizes = [8, 32], strides = [1, 1]} : vector<8x128xf32> to vector<8x32xf32>
    %294 = vector.extract_strided_slice %290 {offsets = [0, 96], sizes = [8, 32], strides = [1, 1]} : vector<8x128xf32> to vector<8x32xf32>
    %295 = arith.mulf %292, %262 : vector<8x32xf32>
    %296 = arith.mulf %291, %293 : vector<8x32xf32>
    %297 = arith.addf %295, %296 : vector<8x32xf32>
    %298 = math.tanh %297 : vector<8x32xf32>
    %299 = arith.mulf %294, %298 : vector<8x32xf32>
    %cst_42 = arith.constant dense<0.000000e+00> : vector<8x128xf32>
    %300 = tpu.matmul %299, %20, %cst_42 {dimension_numbers = #tpu.dot_dimension_numbers<[1], [0], [0], [1], [0, 0, 1, 1], [], []>} : vector<8x32xf32>, vector<32x128xf32>, vector<8x128xf32> -> vector<8x128xf32>
    %301 = arith.addf %282, %300 : vector<8x128xf32>
    %302 = math.tanh %301 : vector<8x128xf32>
    %303 = vector.broadcast %8 : vector<1x128xf32> to vector<8x128xf32>
    %304 = arith.mulf %303, %302 : vector<8x128xf32>
    %305 = vector.broadcast %11 : vector<1x128xf32> to vector<8x128xf32>
    %306 = arith.addf %304, %305 : vector<8x128xf32>
    %307 = vector.extract_strided_slice %306 {offsets = [0, 0], sizes = [8, 32], strides = [1, 1]} : vector<8x128xf32> to vector<8x32xf32>
    %308 = vector.extract_strided_slice %306 {offsets = [0, 32], sizes = [8, 32], strides = [1, 1]} : vector<8x128xf32> to vector<8x32xf32>
    %309 = vector.extract_strided_slice %306 {offsets = [0, 64], sizes = [8, 32], strides = [1, 1]} : vector<8x128xf32> to vector<8x32xf32>
    %310 = vector.extract_strided_slice %306 {offsets = [0, 96], sizes = [8, 32], strides = [1, 1]} : vector<8x128xf32> to vector<8x32xf32>
    %311 = arith.mulf %308, %278 : vector<8x32xf32>
    %312 = arith.mulf %307, %309 : vector<8x32xf32>
    %313 = arith.addf %311, %312 : vector<8x32xf32>
    %314 = math.tanh %313 : vector<8x32xf32>
    %315 = arith.mulf %310, %314 : vector<8x32xf32>
    %c0_43 = arith.constant 0 : index
    %c0_44 = arith.constant 0 : index
    %316 = vector.load %arg8[%c0_43, %c0_44] : memref<1x32xf32, #tpu.memory_space<vmem>>, vector<1x32xf32>
    %317 = vector.broadcast %316 : vector<1x32xf32> to vector<8x32xf32>
    %318 = arith.mulf %315, %317 : vector<8x32xf32>
    %cst_45 = arith.constant dense<0.000000e+00> : vector<8xf32>
    %319 = vector.multi_reduction <add>, %318, %cst_45 [1] : vector<8x32xf32> to vector<8xf32>
    %320 = vector.shape_cast %319 : vector<8xf32> to vector<8x1xf32>
    %c0_46 = arith.constant 0 : index
    %c0_47 = arith.constant 0 : index
    %321 = vector.load %arg9[%c0_46, %c0_47] : memref<1x1xf32, #tpu.memory_space<vmem>>, vector<1x1xf32>
    %322 = vector.broadcast %321 : vector<1x1xf32> to vector<8x1xf32>
    %323 = arith.addf %320, %322 : vector<8x1xf32>
    %cst_48 = arith.constant 5.000000e-01 : f32
    %324 = vector.broadcast %cst_48 : f32 to vector<8x1xf32>
    %325 = arith.mulf %324, %323 : vector<8x1xf32>
    %326 = math.tanh %325 : vector<8x1xf32>
    %cst_49 = arith.constant 5.000000e-01 : f32
    %327 = vector.broadcast %cst_49 : f32 to vector<8x1xf32>
    %328 = arith.mulf %327, %326 : vector<8x1xf32>
    %cst_50 = arith.constant 5.000000e-01 : f32
    %329 = vector.broadcast %cst_50 : f32 to vector<8x1xf32>
    %330 = arith.addf %328, %329 : vector<8x1xf32>
    %c0_51 = arith.constant 0 : index
    %c0_52 = arith.constant 0 : index
    %331 = vector.load %arg10[%c0_51, %c0_52] : memref<8x1xf32, #tpu.memory_space<vmem>>, vector<8x1xf32>
    tpu.vector_store %arg10[%c0_51, %c0_52], %330 {strides = array<i32>} : memref<8x1xf32, #tpu.memory_space<vmem>>, vector<8x1xf32>,
    return
  }
  func.func @transform_0(%arg0: i32) -> (i32, i32, i32) {
    %c0_i32 = arith.constant 0 : i32
    %c0_i32_0 = arith.constant 0 : i32
    %c0_i32_1 = arith.constant 0 : i32
    return %arg0, %c0_i32, %c0_i32_0 : i32, i32, i32
  }
  func.func @transform_1(%arg0: i32) -> (i32, i32) {
    %c0_i32 = arith.constant 0 : i32
    %c0_i32_0 = arith.constant 0 : i32
    %c0_i32_1 = arith.constant 0 : i32
    return %c0_i32, %c0_i32_0 : i32, i32
  }
  func.func @transform_2(%arg0: i32) -> (i32, i32) {
    %c0_i32 = arith.constant 0 : i32
    %c0_i32_0 = arith.constant 0 : i32
    %c0_i32_1 = arith.constant 0 : i32
    return %c0_i32, %c0_i32_0 : i32, i32
  }
  func.func @transform_3(%arg0: i32) -> (i32, i32) {
    %c0_i32 = arith.constant 0 : i32
    %c0_i32_0 = arith.constant 0 : i32
    %c0_i32_1 = arith.constant 0 : i32
    return %c0_i32, %c0_i32_0 : i32, i32
  }
  func.func @transform_4(%arg0: i32) -> (i32, i32) {
    %c0_i32 = arith.constant 0 : i32
    %c0_i32_0 = arith.constant 0 : i32
    %c0_i32_1 = arith.constant 0 : i32
    return %c0_i32, %c0_i32_0 : i32, i32
  }
  func.func @transform_5(%arg0: i32) -> (i32, i32) {
    %c0_i32 = arith.constant 0 : i32
    %c0_i32_0 = arith.constant 0 : i32
    %c0_i32_1 = arith.constant 0 : i32
    return %c0_i32, %c0_i32_0 : i32, i32
  }
  func.func @transform_6(%arg0: i32) -> (i32, i32) {
    %c0_i32 = arith.constant 0 : i32
    %c0_i32_0 = arith.constant 0 : i32
    %c0_i32_1 = arith.constant 0 : i32
    return %c0_i32, %c0_i32_0 : i32, i32
  }
  func.func @transform_7(%arg0: i32) -> (i32, i32) {
    %c0_i32 = arith.constant 0 : i32
    %c0_i32_0 = arith.constant 0 : i32
    %c0_i32_1 = arith.constant 0 : i32
    return %c0_i32, %c0_i32_0 : i32, i32
  }
  func.func @transform_8(%arg0: i32) -> (i32, i32) {
    %c0_i32 = arith.constant 0 : i32
    %c0_i32_0 = arith.constant 0 : i32
    %c0_i32_1 = arith.constant 0 : i32
    return %c0_i32, %c0_i32_0 : i32, i32
  }
  func.func @transform_9(%arg0: i32) -> (i32, i32) {
    %c0_i32 = arith.constant 0 : i32
    %c0_i32_0 = arith.constant 0 : i32
    return %arg0, %c0_i32 : i32, i32
  }
}

</mosaic_0001>

<llo_original>
// kernel: tpu_custom_call.1
$region0: #{tpu_custom_call.1}
  #allocation0 [shape = 'u32[]', space=smem, size = 0x4, offset = 0x4, fixed_abs, tag = 'smem constant byte address 0x4 - core index']
  #allocation1 [shape = 'u32[72,128]{1,0:T(1,128)}', space=vmem, size = 0x9000, scoped, tag = 'internal scratch']
  #allocation2 [shape = 'f32[1,1]{1,0:T(1,128)S(1)}', space=vmem, size = 0x200, scoped, tag = 'scoped memory for tpu_custom_call.1']
  %s0 = inlined_call_operand.vmem [shape: f32[1,64,4], index: 0, kind: input, shape index: {}]
  %s1 = inlined_call_operand.vmem [shape: f32[4,128], index: 1, kind: input, shape index: {}]
  %s2 = inlined_call_operand.vmem [shape: f32[32,128], index: 2, kind: input, shape index: {}]
  %s3 = inlined_call_operand.vmem [shape: f32[1,128], index: 3, kind: input, shape index: {}]
  %s4 = inlined_call_operand.vmem [shape: f32[32,128], index: 4, kind: input, shape index: {}]
  %s5 = inlined_call_operand.hbm [shape: f32[32,128], index: 5, kind: input, shape index: {}]
  %s6 = inlined_call_operand.vmem [shape: f32[1,128], index: 6, kind: input, shape index: {}]
  %s7 = inlined_call_operand.vmem [shape: f32[1,32], index: 7, kind: input, shape index: {}]
  %s8 = inlined_call_operand.<no memory space> [shape: f32[1,1], index: 8, kind: input, shape index: {}]
  %s9 = inlined_call_operand.vmem [shape: f32[8,1], index: 9, kind: output, shape index: {}]
  %s10 = sld [smem:[#allocation0]]
  $region50: #{tpu_custom_call.1} parent=0
    _
  %s12 = ssub.s32 1, %s10
  %s13 = scalar_select 0, %s12, %s10
  %v14 = vstv %s8
  %15 = vst [vmem:[#allocation2] sm:$0x1] %v14
  $region1: #{tpu_custom_call.1} parent=0
    #allocation3 [shape = 'u8[16384]{0}', space=vmem, size = 0x4000, scoped, tag = 'input window, operand 5, single buffered']
    #allocation4 [shape = 's32[1]{0}', space=sflag, size = 0x4, scoped, tag = 'scoped memory for tpu_custom_call.1']
    %16 = vsyncpa [#allocation4], 0
    // Predicated region
    $region2: #{tpu_custom_call.1} parent=1 // pred_check
      _
    $region3: #{tpu_custom_call.1} parent=1 // pred_check_branch
      %18 = sbr.rel (0) target = $region5
    $region4: #{tpu_custom_call.1} parent=1 // pred_region
      _
    $region5: #{tpu_custom_call.1} parent=1 // pred_fallthru
      _
    // Predicated region
    $region6: #{tpu_custom_call.1} parent=1 // pred_check
      _
    $region7: #{tpu_custom_call.1} parent=1 // pred_check_branch
      %20 = sbr.rel (0) target = $region9
    $region8: #{tpu_custom_call.1} parent=1 // pred_region
      _
    $region9: #{tpu_custom_call.1} parent=1 // pred_fallthru
      _
    // Predicated region
    $region10: #{tpu_custom_call.1} parent=1 // pred_check
      _
    $region11: #{tpu_custom_call.1} parent=1 // pred_check_branch
      %22 = sbr.rel (0) target = $region13
    $region12: #{tpu_custom_call.1} parent=1 // pred_region
      _
    $region13: #{tpu_custom_call.1} parent=1 // pred_fallthru
      _
    // Predicated region
    $region14: #{tpu_custom_call.1} parent=1 // pred_check
      _
    $region15: #{tpu_custom_call.1} parent=1 // pred_check_branch
      %24 = sbr.rel (0) target = $region17
    $region16: #{tpu_custom_call.1} parent=1 // pred_region
      _
    $region17: #{tpu_custom_call.1} parent=1 // pred_fallthru
      _
    // Predicated region
    $region18: #{tpu_custom_call.1} parent=1 // pred_check
      _
    $region19: #{tpu_custom_call.1} parent=1 // pred_check_branch
      %26 = sbr.rel (0) target = $region21
    $region20: #{tpu_custom_call.1} parent=1 // pred_region
      _
    $region21: #{tpu_custom_call.1} parent=1 // pred_fallthru
      _
    // Predicated region
    $region22: #{tpu_custom_call.1} parent=1 // pred_check
      _
    $region23: #{tpu_custom_call.1} parent=1 // pred_check_branch
      %28 = sbr.rel (0) target = $region25
    $region24: #{tpu_custom_call.1} parent=1 // pred_region
      %30 = vsyncadd [#allocation4], 0
      %s31 = sshll.u32 %s5, 4
      %s32 = int_to_ptr.hbm [resolvable:$true] %s31
      %s33 = sshll.u32 [#allocation3], 4
      %s34 = int_to_ptr.vmem [resolvable:$true] %s33
      %39 = dma.hbm_to_vmem [thread:$0]  %s32, 512, %s34, [#allocation4], 128, 128, 8
    $region25: #{tpu_custom_call.1} parent=1 // pred_fallthru
      _
    // Predicated region
    $region26: #{tpu_custom_call.1} parent=1 // pred_check
      _
    $region27: #{tpu_custom_call.1} parent=1 // pred_check_branch
      %41 = sbr.rel (0) target = $region29
    $region28: #{tpu_custom_call.1} parent=1 // pred_region
      _
    $region29: #{tpu_custom_call.1} parent=1 // pred_fallthru
      _
    // Predicated region
    $region30: #{tpu_custom_call.1} parent=1 // pred_check
      _
    $region31: #{tpu_custom_call.1} parent=1 // pred_check_branch
      %43 = sbr.rel (0) target = $region33
    $region32: #{tpu_custom_call.1} parent=1 // pred_region
      _
    $region33: #{tpu_custom_call.1} parent=1 // pred_fallthru
      _
    // Predicated region
    $region34: #{tpu_custom_call.1} parent=1 // pred_check
      _
    $region35: #{tpu_custom_call.1} parent=1 // pred_check_branch
      %45 = sbr.rel (0) target = $region37
    $region36: #{tpu_custom_call.1} parent=1 // pred_region
      _
    $region37: #{tpu_custom_call.1} parent=1 // pred_fallthru
      _
    // Predicated region
    $region38: #{tpu_custom_call.1} parent=1 // pred_check
      _
    $region39: #{tpu_custom_call.1} parent=1 // pred_check_branch
      %47 = sbr.rel (0) target = $region41
    $region40: #{tpu_custom_call.1} parent=1 // pred_region
      %49 = dma.done [#allocation4], 512
    $region41: #{tpu_custom_call.1} parent=1 // pred_fallthru
      _
    %v50 = vlaneseq
    %v51 = vand.u32 %v50, 127
    %vm52 = vcmp.ge.s32.totalorder %v51, 64
    %vm53 = vcmp.lt.s32.totalorder %v51, 96
    %vm54 = vmand %vm52, %vm53
    %v55 = vsel %vm54, 1.0, 0.5
    %v56 = vsel %vm54, 0.0, 0.5
    %v57 = vld [vmem:[%s1] sm:$0xf]
    %v58 = vmul.f32 %v57, %v55
    %v59 = vld [vmem:[%s2] sm:$0xff]
    %v60 = vld [vmem:[%s2 + $0x8] sm:$0xff]
    %v61 = vld [vmem:[%s2 + $0x10] sm:$0xff]
    %v62 = vld [vmem:[%s2 + $0x18] sm:$0xff]
    %v63 = vmul.f32 %v59, %v55
    %v64 = vmul.f32 %v60, %v55
    %v65 = vmul.f32 %v61, %v55
    %v66 = vmul.f32 %v62, %v55
    %v67 = vld [vmem:[%s4] sm:$0xff]
    %v68 = vld [vmem:[%s4 + $0x8] sm:$0xff]
    %v69 = vld [vmem:[%s4 + $0x10] sm:$0xff]
    %v70 = vld [vmem:[%s4 + $0x18] sm:$0xff]
    %v71 = vmul.f32 %v67, %v55
    %v72 = vmul.f32 %v68, %v55
    %v73 = vmul.f32 %v69, %v55
    %v74 = vmul.f32 %v70, %v55
    %v75 = vld [vmem:[#allocation3] sm:$0xff]
    %v76 = vld [vmem:[#allocation3 + $0x8] sm:$0xff]
    %v77 = vld [vmem:[#allocation3 + $0x10] sm:$0xff]
    %v78 = vld [vmem:[#allocation3 + $0x18] sm:$0xff]
    %v79 = vmul.f32 %v75, %v55
    %v80 = vmul.f32 %v76, %v55
    %v81 = vmul.f32 %v77, %v55
    %v82 = vmul.f32 %v78, %v55
    %v83 = vld [vmem:[%s0] sm:$0xff]
    %v84 = vld [vmem:[%s0 + $0x8] sm:$0xff]
    %v85 = vld [vmem:[%s0 + $0x10] sm:$0xff]
    %v86 = vld [vmem:[%s0 + $0x18] sm:$0xff]
    %v87 = vld [vmem:[%s0 + $0x20] sm:$0xff]
    %v88 = vld [vmem:[%s0 + $0x28] sm:$0xff]
    %v89 = vld [vmem:[%s0 + $0x30] sm:$0xff]
    %v90 = vld [vmem:[%s0 + $0x38] sm:$0xff]
    %v91 = vld [vmem:[%s3] sm:$0x1]
    %v92 = vmul.f32 %v91, %v55
    %v94 = vperm.slane %v92, 0
    %vm96 = vcmask 31744
    %v98 = vsel %vm96, %v83, 0
    %v101 = vsel %vm96, %v84, 0
    %v104 = vsel %vm96, %v85, 0
    %v107 = vsel %vm96, %v86, 0
    %v110 = vsel %vm96, %v87, 0
    %v113 = vsel %vm96, %v88, 0
    %v116 = vsel %vm96, %v89, 0
    %v119 = vsel %vm96, %v90, 0
    %vm121 = vcmask 1043456
    %v123 = vsel %vm121, %v58, 0
    %125 = vmatpush.msra.mxu0 0.0
    %126 = vmatpush.msra.mxu0 0.0
    %127 = vmatpush.msra.mxu0 0.0
    %128 = vmatpush.msra.mxu0 0.0
    %129 = vmatpush.msra.mxu0 0.0
    %130 = vmatpush.msra.mxu0 0.0
    %131 = vmatpush.msra.mxu0 0.0
    %132 = vmatpush.msra.mxu0 0.0
    %133 = vmatpush.msra.mxu0 0.0
    %134 = vmatpush.msra.mxu0 0.0
    %135 = vmatpush.msra.mxu0 0.0
    %136 = vmatpush.msra.mxu0 0.0
    %137 = vmatpush.msra.mxu0 0.0
    %138 = vmatpush.msra.mxu0 0.0
    %139 = vmatpush.msra.mxu0 0.0
    %140 = vmatpush.msra.mxu0 %v123
    %141 = vmatmul.f32.gmra.mxu0 %v98
    %v142 = vpop.f32.mrf.mxu0
    %v143 = vadd.f32 %v94, %v142
    %144 = vmatmul.f32.gmra.mxu0 %v101
    %v145 = vpop.f32.mrf.mxu0
    %v146 = vadd.f32 %v94, %v145
    %147 = vmatmul.f32.gmra.mxu0 %v104
    %v148 = vpop.f32.mrf.mxu0
    %v149 = vadd.f32 %v94, %v148
    %150 = vmatmul.f32.gmra.mxu0 %v107
    %v151 = vpop.f32.mrf.mxu0
    %v152 = vadd.f32 %v94, %v151
    %153 = vmatmul.f32.gmra.mxu0 %v110
    %v154 = vpop.f32.mrf.mxu0
    %v155 = vadd.f32 %v94, %v154
    %156 = vmatmul.f32.gmra.mxu0 %v113
    %v157 = vpop.f32.mrf.mxu0
    %v158 = vadd.f32 %v94, %v157
    %159 = vmatmul.f32.gmra.mxu0 %v116
    %v160 = vpop.f32.mrf.mxu0
    %v161 = vadd.f32 %v94, %v160
    %162 = vmatmul.f32.gmra.mxu0 %v119
    %v163 = vpop.f32.mrf.mxu0
    %v164 = vadd.f32 %v94, %v163
    %165 = vdwg.mxu0
    %v166 = vld [vmem:[%s6] sm:$0x1]
    %v167 = vmul.f32 %v166, %v55
    %v169 = vperm.slane %v167, 0
    %vm171 = vcmask 261120
    %v173 = vsel %vm171, 0.0, 0
    %175 = vmatpush.msra.mxu0 0.0
    %176 = vmatpush.msra.mxu0 0.0
    %177 = vmatpush.msra.mxu0 0.0
    %178 = vmatpush.msra.mxu0 0.0
    %179 = vmatpush.msra.mxu0 0.0
    %180 = vmatpush.msra.mxu0 0.0
    %181 = vmatpush.msra.mxu0 0.0
    %182 = vmatpush.msra.mxu0 0.0
    %183 = vmatpush.msra.mxu0 0.0
    %184 = vmatpush.msra.mxu0 0.0
    %185 = vmatpush.msra.mxu0 0.0
    %186 = vmatpush.msra.mxu0 0.0
    %187 = vmatpush.msra.mxu0 %v82
    %188 = vmatpush.msra.mxu0 %v81
    %189 = vmatpush.msra.mxu0 %v80
    %190 = vmatpush.msra.mxu0 %v79
    %191 = vmatmul.f32.gmra.mxu0 %v173
    %v192 = vpop.f32.mrf.mxu0
    %v193 = vadd.f32 %v169, %v192
    %194 = vdwg.mxu0
    %195 = vmatpush.msra.mxu0 0.0
    %196 = vmatpush.msra.mxu0 0.0
    %197 = vmatpush.msra.mxu0 0.0
    %198 = vmatpush.msra.mxu0 0.0
    %199 = vmatpush.msra.mxu0 0.0
    %200 = vmatpush.msra.mxu0 0.0
    %201 = vmatpush.msra.mxu0 0.0
    %202 = vmatpush.msra.mxu0 0.0
    %203 = vmatpush.msra.mxu0 0.0
    %204 = vmatpush.msra.mxu0 0.0
    %205 = vmatpush.msra.mxu0 0.0
    %206 = vmatpush.msra.mxu0 0.0
    %207 = vmatpush.msra.mxu0 %v66
    %208 = vmatpush.msra.mxu0 %v65
    %209 = vmatpush.msra.mxu0 %v64
    %210 = vmatpush.msra.mxu0 %v63
    %211 = vmatmul.f32.gmra.mxu0 %v173
    %v212 = vpop.f32.mrf.mxu0
    %v213 = vadd.f32 0.0, %v212
    %214 = vdwg.mxu0
    %v215 = vadd.f32 %v143, %v213
    %v216 = vtanh.pop %v215
    %v217 = vmul.f32 %v55, %v216
    %v218 = vadd.f32 %v217, %v56
    %v219 = vmul.f32 %v218, 0.0
    %221 = vrot.lane.b32.xlu0 %v218, 64
    %v222 = vpop.permute.xlu0 %221
    %v224 = vmul.f32 %v218, %v222
    %226 = vrot.lane.b32.xlu0 %v224, 32
    %v227 = vpop.permute.xlu0 %226
    %v229 = vadd.f32 %v219, %v227
    %v230 = vtanh.pop %v229
    %232 = vrot.lane.b32.xlu0 %v230, 64
    %v233 = vpop.permute.xlu0 %232
    %v235 = vmul.f32 %v218, %v233
    %237 = vrot.lane.b32.xlu0 %v235, 32
    %v238 = vpop.permute.xlu0 %237
    %v239 = vsel %vm171, %v238, 0
    %241 = vmatpush.msra.mxu0 0.0
    %242 = vmatpush.msra.mxu0 0.0
    %243 = vmatpush.msra.mxu0 0.0
    %244 = vmatpush.msra.mxu0 0.0
    %245 = vmatpush.msra.mxu0 0.0
    %246 = vmatpush.msra.mxu0 0.0
    %247 = vmatpush.msra.mxu0 0.0
    %248 = vmatpush.msra.mxu0 0.0
    %249 = vmatpush.msra.mxu0 0.0
    %250 = vmatpush.msra.mxu0 0.0
    %251 = vmatpush.msra.mxu0 0.0
    %252 = vmatpush.msra.mxu0 0.0
    %253 = vmatpush.msra.mxu0 %v74
    %254 = vmatpush.msra.mxu0 %v73
    %255 = vmatpush.msra.mxu0 %v72
    %256 = vmatpush.msra.mxu0 %v71
    %257 = vmatmul.f32.gmra.mxu0 %v239
    %v258 = vpop.f32.mrf.mxu0
    %v259 = vadd.f32 0.0, %v258
    %260 = vdwg.mxu0
    %v261 = vadd.f32 %v193, %v259
    %v262 = vtanh.pop %v261
    %v263 = vmul.f32 %v55, %v262
    %v264 = vadd.f32 %v263, %v56
    %v265 = vmul.f32 %v264, 0.0
    %267 = vrot.lane.b32.xlu0 %v264, 64
    %v268 = vpop.permute.xlu0 %267
    %v270 = vmul.f32 %v264, %v268
    %272 = vrot.lane.b32.xlu0 %v270, 32
    %v273 = vpop.permute.xlu0 %272
    %v275 = vadd.f32 %v265, %v273
    %v276 = vtanh.pop %v275
    %278 = vrot.lane.b32.xlu0 %v276, 64
    %v279 = vpop.permute.xlu0 %278
    %v281 = vmul.f32 %v264, %v279
    %283 = vrot.lane.b32.xlu0 %v281, 32
    %v284 = vpop.permute.xlu0 %283
    %v285 = vsel %vm171, %v284, 0
    %287 = vmatpush.msra.mxu0 0.0
    %288 = vmatpush.msra.mxu0 0.0
    %289 = vmatpush.msra.mxu0 0.0
    %290 = vmatpush.msra.mxu0 0.0
    %291 = vmatpush.msra.mxu0 0.0
    %292 = vmatpush.msra.mxu0 0.0
    %293 = vmatpush.msra.mxu0 0.0
    %294 = vmatpush.msra.mxu0 0.0
    %295 = vmatpush.msra.mxu0 0.0
    %296 = vmatpush.msra.mxu0 0.0
    %297 = vmatpush.msra.mxu0 0.0
    %298 = vmatpush.msra.mxu0 0.0
    %299 = vmatpush.msra.mxu0 %v82
    %300 = vmatpush.msra.mxu0 %v81
    %301 = vmatpush.msra.mxu0 %v80
    %302 = vmatpush.msra.mxu0 %v79
    %303 = vmatmul.f32.gmra.mxu0 %v285
    %v304 = vpop.f32.mrf.mxu0
    %v305 = vadd.f32 %v169, %v304
    %306 = vdwg.mxu0
    %307 = vmatpush.msra.mxu0 0.0
    %308 = vmatpush.msra.mxu0 0.0
    %309 = vmatpush.msra.mxu0 0.0
    %310 = vmatpush.msra.mxu0 0.0
    %311 = vmatpush.msra.mxu0 0.0
    %312 = vmatpush.msra.mxu0 0.0
    %313 = vmatpush.msra.mxu0 0.0
    %314 = vmatpush.msra.mxu0 0.0
    %315 = vmatpush.msra.mxu0 0.0
    %316 = vmatpush.msra.mxu0 0.0
    %317 = vmatpush.msra.mxu0 0.0
    %318 = vmatpush.msra.mxu0 0.0
    %319 = vmatpush.msra.mxu0 %v66
    %320 = vmatpush.msra.mxu0 %v65
    %321 = vmatpush.msra.mxu0 %v64
    %322 = vmatpush.msra.mxu0 %v63
    %323 = vmatmul.f32.gmra.mxu0 %v239
    %v324 = vpop.f32.mrf.mxu0
    %v325 = vadd.f32 0.0, %v324
    %326 = vdwg.mxu0
    %v327 = vadd.f32 %v146, %v325
    %v328 = vtanh.pop %v327
    %v329 = vmul.f32 %v55, %v328
    %v330 = vadd.f32 %v329, %v56
    %v331 = vmul.f32 %v330, %v229
    %333 = vrot.lane.b32.xlu0 %v330, 64
    %v334 = vpop.permute.xlu0 %333
    %v336 = vmul.f32 %v330, %v334
    %338 = vrot.lane.b32.xlu0 %v336, 32
    %v339 = vpop.permute.xlu0 %338
    %v341 = vadd.f32 %v331, %v339
    %v342 = vtanh.pop %v341
    %344 = vrot.lane.b32.xlu0 %v342, 64
    %v345 = vpop.permute.xlu0 %344
    %v347 = vmul.f32 %v330, %v345
    %349 = vrot.lane.b32.xlu0 %v347, 32
    %v350 = vpop.permute.xlu0 %349
    %v351 = vsel %vm171, %v350, 0
    %353 = vmatpush.msra.mxu0 0.0
    %354 = vmatpush.msra.mxu0 0.0
    %355 = vmatpush.msra.mxu0 0.0
    %356 = vmatpush.msra.mxu0 0.0
    %357 = vmatpush.msra.mxu0 0.0
    %358 = vmatpush.msra.mxu0 0.0
    %359 = vmatpush.msra.mxu0 0.0
    %360 = vmatpush.msra.mxu0 0.0
    %361 = vmatpush.msra.mxu0 0.0
    %362 = vmatpush.msra.mxu0 0.0
    %363 = vmatpush.msra.mxu0 0.0
    %364 = vmatpush.msra.mxu0 0.0
    %365 = vmatpush.msra.mxu0 %v74
    %366 = vmatpush.msra.mxu0 %v73
    %367 = vmatpush.msra.mxu0 %v72
    %368 = vmatpush.msra.mxu0 %v71
    %369 = vmatmul.f32.gmra.mxu0 %v351
    %v370 = vpop.f32.mrf.mxu0
    %v371 = vadd.f32 0.0, %v370
    %372 = vdwg.mxu0
    %v373 = vadd.f32 %v305, %v371
    %v374 = vtanh.pop %v373
    %v375 = vmul.f32 %v55, %v374
    %v376 = vadd.f32 %v375, %v56
    %v377 = vmul.f32 %v376, %v275
    %379 = vrot.lane.b32.xlu0 %v376, 64
    %v380 = vpop.permute.xlu0 %379
    %v382 = vmul.f32 %v376, %v380
    %384 = vrot.lane.b32.xlu0 %v382, 32
    %v385 = vpop.permute.xlu0 %384
    %v387 = vadd.f32 %v377, %v385
    %v388 = vtanh.pop %v387
    %390 = vrot.lane.b32.xlu0 %v388, 64
    %v391 = vpop.permute.xlu0 %390
    %v393 = vmul.f32 %v376, %v391
    %395 = vrot.lane.b32.xlu0 %v393, 32
    %v396 = vpop.permute.xlu0 %395
    %v397 = vsel %vm171, %v396, 0
    %399 = vmatpush.msra.mxu0 0.0
    %400 = vmatpush.msra.mxu0 0.0
    %401 = vmatpush.msra.mxu0 0.0
    %402 = vmatpush.msra.mxu0 0.0
    %403 = vmatpush.msra.mxu0 0.0
    %404 = vmatpush.msra.mxu0 0.0
    %405 = vmatpush.msra.mxu0 0.0
    %406 = vmatpush.msra.mxu0 0.0
    %407 = vmatpush.msra.mxu0 0.0
    %408 = vmatpush.msra.mxu0 0.0
    %409 = vmatpush.msra.mxu0 0.0
    %410 = vmatpush.msra.mxu0 0.0
    %411 = vmatpush.msra.mxu0 %v82
    %412 = vmatpush.msra.mxu0 %v81
    %413 = vmatpush.msra.mxu0 %v80
    %414 = vmatpush.msra.mxu0 %v79
    %415 = vmatmul.f32.gmra.mxu0 %v397
    %v416 = vpop.f32.mrf.mxu0
    %v417 = vadd.f32 %v169, %v416
    %418 = vdwg.mxu0
    %419 = vmatpush.msra.mxu0 0.0
    %420 = vmatpush.msra.mxu0 0.0
    %421 = vmatpush.msra.mxu0 0.0
    %422 = vmatpush.msra.mxu0 0.0
    %423 = vmatpush.msra.mxu0 0.0
    %424 = vmatpush.msra.mxu0 0.0
    %425 = vmatpush.msra.mxu0 0.0
    %426 = vmatpush.msra.mxu0 0.0
    %427 = vmatpush.msra.mxu0 0.0
    %428 = vmatpush.msra.mxu0 0.0
    %429 = vmatpush.msra.mxu0 0.0
    %430 = vmatpush.msra.mxu0 0.0
    %431 = vmatpush.msra.mxu0 %v66
    %432 = vmatpush.msra.mxu0 %v65
    %433 = vmatpush.msra.mxu0 %v64
    %434 = vmatpush.msra.mxu0 %v63
    %435 = vmatmul.f32.gmra.mxu0 %v351
    %v436 = vpop.f32.mrf.mxu0
    %v437 = vadd.f32 0.0, %v436
    %438 = vdwg.mxu0
    %v439 = vadd.f32 %v149, %v437
    %v440 = vtanh.pop %v439
    %v441 = vmul.f32 %v55, %v440
    %v442 = vadd.f32 %v441, %v56
    %v443 = vmul.f32 %v442, %v341
    %445 = vrot.lane.b32.xlu0 %v442, 64
    %v446 = vpop.permute.xlu0 %445
    %v448 = vmul.f32 %v442, %v446
    %450 = vrot.lane.b32.xlu0 %v448, 32
    %v451 = vpop.permute.xlu0 %450
    %v453 = vadd.f32 %v443, %v451
    %v454 = vtanh.pop %v453
    %456 = vrot.lane.b32.xlu0 %v454, 64
    %v457 = vpop.permute.xlu0 %456
    %v459 = vmul.f32 %v442, %v457
    %461 = vrot.lane.b32.xlu0 %v459, 32
    %v462 = vpop.permute.xlu0 %461
    %v463 = vsel %vm171, %v462, 0
    %465 = vmatpush.msra.mxu0 0.0
    %466 = vmatpush.msra.mxu0 0.0
    %467 = vmatpush.msra.mxu0 0.0
    %468 = vmatpush.msra.mxu0 0.0
    %469 = vmatpush.msra.mxu0 0.0
    %470 = vmatpush.msra.mxu0 0.0
    %471 = vmatpush.msra.mxu0 0.0
    %472 = vmatpush.msra.mxu0 0.0
    %473 = vmatpush.msra.mxu0 0.0
    %474 = vmatpush.msra.mxu0 0.0
    %475 = vmatpush.msra.mxu0 0.0
    %476 = vmatpush.msra.mxu0 0.0
    %477 = vmatpush.msra.mxu0 %v74
    %478 = vmatpush.msra.mxu0 %v73
    %479 = vmatpush.msra.mxu0 %v72
    %480 = vmatpush.msra.mxu0 %v71
    %481 = vmatmul.f32.gmra.mxu0 %v463
    %v482 = vpop.f32.mrf.mxu0
    %v483 = vadd.f32 0.0, %v482
    %484 = vdwg.mxu0
    %v485 = vadd.f32 %v417, %v483
    %v486 = vtanh.pop %v485
    %v487 = vmul.f32 %v55, %v486
    %v488 = vadd.f32 %v487, %v56
    %v489 = vmul.f32 %v488, %v387
    %491 = vrot.lane.b32.xlu0 %v488, 64
    %v492 = vpop.permute.xlu0 %491
    %v494 = vmul.f32 %v488, %v492
    %496 = vrot.lane.b32.xlu0 %v494, 32
    %v497 = vpop.permute.xlu0 %496
    %v499 = vadd.f32 %v489, %v497
    %v500 = vtanh.pop %v499
    %502 = vrot.lane.b32.xlu0 %v500, 64
    %v503 = vpop.permute.xlu0 %502
    %v505 = vmul.f32 %v488, %v503
    %507 = vrot.lane.b32.xlu0 %v505, 32
    %v508 = vpop.permute.xlu0 %507
    %v509 = vsel %vm171, %v508, 0
    %511 = vmatpush.msra.mxu0 0.0
    %512 = vmatpush.msra.mxu0 0.0
    %513 = vmatpush.msra.mxu0 0.0
    %514 = vmatpush.msra.mxu0 0.0
    %515 = vmatpush.msra.mxu0 0.0
    %516 = vmatpush.msra.mxu0 0.0
    %517 = vmatpush.msra.mxu0 0.0
    %518 = vmatpush.msra.mxu0 0.0
    %519 = vmatpush.msra.mxu0 0.0
    %520 = vmatpush.msra.mxu0 0.0
    %521 = vmatpush.msra.mxu0 0.0
    %522 = vmatpush.msra.mxu0 0.0
    %523 = vmatpush.msra.mxu0 %v82
    %524 = vmatpush.msra.mxu0 %v81
    %525 = vmatpush.msra.mxu0 %v80
    %526 = vmatpush.msra.mxu0 %v79
    %527 = vmatmul.f32.gmra.mxu0 %v509
    %v528 = vpop.f32.mrf.mxu0
    %v529 = vadd.f32 %v169, %v528
    %530 = vdwg.mxu0
    %531 = vmatpush.msra.mxu0 0.0
    %532 = vmatpush.msra.mxu0 0.0
    %533 = vmatpush.msra.mxu0 0.0
    %534 = vmatpush.msra.mxu0 0.0
    %535 = vmatpush.msra.mxu0 0.0
    %536 = vmatpush.msra.mxu0 0.0
    %537 = vmatpush.msra.mxu0 0.0
    %538 = vmatpush.msra.mxu0 0.0
    %539 = vmatpush.msra.mxu0 0.0
    %540 = vmatpush.msra.mxu0 0.0
    %541 = vmatpush.msra.mxu0 0.0
    %542 = vmatpush.msra.mxu0 0.0
    %543 = vmatpush.msra.mxu0 %v66
    %544 = vmatpush.msra.mxu0 %v65
    %545 = vmatpush.msra.mxu0 %v64
    %546 = vmatpush.msra.mxu0 %v63
    %547 = vmatmul.f32.gmra.mxu0 %v463
    %v548 = vpop.f32.mrf.mxu0
    %v549 = vadd.f32 0.0, %v548
    %550 = vdwg.mxu0
    %v551 = vadd.f32 %v152, %v549
    %v552 = vtanh.pop %v551
    %v553 = vmul.f32 %v55, %v552
    %v554 = vadd.f32 %v553, %v56
    %v555 = vmul.f32 %v554, %v453
    %557 = vrot.lane.b32.xlu0 %v554, 64
    %v558 = vpop.permute.xlu0 %557
    %v560 = vmul.f32 %v554, %v558
    %562 = vrot.lane.b32.xlu0 %v560, 32
    %v563 = vpop.permute.xlu0 %562
    %v565 = vadd.f32 %v555, %v563
    %v566 = vtanh.pop %v565
    %568 = vrot.lane.b32.xlu0 %v566, 64
    %v569 = vpop.permute.xlu0 %568
    %v571 = vmul.f32 %v554, %v569
    %573 = vrot.lane.b32.xlu0 %v571, 32
    %v574 = vpop.permute.xlu0 %573
    %v575 = vsel %vm171, %v574, 0
    %577 = vmatpush.msra.mxu0 0.0
    %578 = vmatpush.msra.mxu0 0.0
    %579 = vmatpush.msra.mxu0 0.0
    %580 = vmatpush.msra.mxu0 0.0
    %581 = vmatpush.msra.mxu0 0.0
    %582 = vmatpush.msra.mxu0 0.0
    %583 = vmatpush.msra.mxu0 0.0
    %584 = vmatpush.msra.mxu0 0.0
    %585 = vmatpush.msra.mxu0 0.0
    %586 = vmatpush.msra.mxu0 0.0
    %587 = vmatpush.msra.mxu0 0.0
    %588 = vmatpush.msra.mxu0 0.0
    %589 = vmatpush.msra.mxu0 %v74
    %590 = vmatpush.msra.mxu0 %v73
    %591 = vmatpush.msra.mxu0 %v72
    %592 = vmatpush.msra.mxu0 %v71
    %593 = vmatmul.f32.gmra.mxu0 %v575
    %v594 = vpop.f32.mrf.mxu0
    %v595 = vadd.f32 0.0, %v594
    %596 = vdwg.mxu0
    %v597 = vadd.f32 %v529, %v595
    %v598 = vtanh.pop %v597
    %v599 = vmul.f32 %v55, %v598
    %v600 = vadd.f32 %v599, %v56
    %v601 = vmul.f32 %v600, %v499
    %603 = vrot.lane.b32.xlu0 %v600, 64
    %v604 = vpop.permute.xlu0 %603
    %v606 = vmul.f32 %v600, %v604
    %608 = vrot.lane.b32.xlu0 %v606, 32
    %v609 = vpop.permute.xlu0 %608
    %v611 = vadd.f32 %v601, %v609
    %v612 = vtanh.pop %v611
    %614 = vrot.lane.b32.xlu0 %v612, 64
    %v615 = vpop.permute.xlu0 %614
    %v617 = vmul.f32 %v600, %v615
    %619 = vrot.lane.b32.xlu0 %v617, 32
    %v620 = vpop.permute.xlu0 %619
    %v621 = vsel %vm171, %v620, 0
    %623 = vmatpush.msra.mxu0 0.0
    %624 = vmatpush.msra.mxu0 0.0
    %625 = vmatpush.msra.mxu0 0.0
    %626 = vmatpush.msra.mxu0 0.0
    %627 = vmatpush.msra.mxu0 0.0
    %628 = vmatpush.msra.mxu0 0.0
    %629 = vmatpush.msra.mxu0 0.0
    %630 = vmatpush.msra.mxu0 0.0
    %631 = vmatpush.msra.mxu0 0.0
    %632 = vmatpush.msra.mxu0 0.0
    %633 = vmatpush.msra.mxu0 0.0
    %634 = vmatpush.msra.mxu0 0.0
    %635 = vmatpush.msra.mxu0 %v82
    %636 = vmatpush.msra.mxu0 %v81
    %637 = vmatpush.msra.mxu0 %v80
    %638 = vmatpush.msra.mxu0 %v79
    %639 = vmatmul.f32.gmra.mxu0 %v621
    %v640 = vpop.f32.mrf.mxu0
    %v641 = vadd.f32 %v169, %v640
    %642 = vdwg.mxu0
    %643 = vmatpush.msra.mxu0 0.0
    %644 = vmatpush.msra.mxu0 0.0
    %645 = vmatpush.msra.mxu0 0.0
    %646 = vmatpush.msra.mxu0 0.0
    %647 = vmatpush.msra.mxu0 0.0
    %648 = vmatpush.msra.mxu0 0.0
    %649 = vmatpush.msra.mxu0 0.0
    %650 = vmatpush.msra.mxu0 0.0
    %651 = vmatpush.msra.mxu0 0.0
    %652 = vmatpush.msra.mxu0 0.0
    %653 = vmatpush.msra.mxu0 0.0
    %654 = vmatpush.msra.mxu0 0.0
    %655 = vmatpush.msra.mxu0 %v66
    %656 = vmatpush.msra.mxu0 %v65
    %657 = vmatpush.msra.mxu0 %v64
    %658 = vmatpush.msra.mxu0 %v63
    %659 = vmatmul.f32.gmra.mxu0 %v575
    %v660 = vpop.f32.mrf.mxu0
    %v661 = vadd.f32 0.0, %v660
    %662 = vdwg.mxu0
    %v663 = vadd.f32 %v155, %v661
    %v664 = vtanh.pop %v663
    %v665 = vmul.f32 %v55, %v664
    %v666 = vadd.f32 %v665, %v56
    %v667 = vmul.f32 %v666, %v565
    %669 = vrot.lane.b32.xlu0 %v666, 64
    %v670 = vpop.permute.xlu0 %669
    %v672 = vmul.f32 %v666, %v670
    %674 = vrot.lane.b32.xlu0 %v672, 32
    %v675 = vpop.permute.xlu0 %674
    %v677 = vadd.f32 %v667, %v675
    %v678 = vtanh.pop %v677
    %680 = vrot.lane.b32.xlu0 %v678, 64
    %v681 = vpop.permute.xlu0 %680
    %v683 = vmul.f32 %v666, %v681
    %685 = vrot.lane.b32.xlu0 %v683, 32
    %v686 = vpop.permute.xlu0 %685
    %v687 = vsel %vm171, %v686, 0
    %689 = vmatpush.msra.mxu0 0.0
    %690 = vmatpush.msra.mxu0 0.0
    %691 = vmatpush.msra.mxu0 0.0
    %692 = vmatpush.msra.mxu0 0.0
    %693 = vmatpush.msra.mxu0 0.0
    %694 = vmatpush.msra.mxu0 0.0
    %695 = vmatpush.msra.mxu0 0.0
    %696 = vmatpush.msra.mxu0 0.0
    %697 = vmatpush.msra.mxu0 0.0
    %698 = vmatpush.msra.mxu0 0.0
    %699 = vmatpush.msra.mxu0 0.0
    %700 = vmatpush.msra.mxu0 0.0
    %701 = vmatpush.msra.mxu0 %v74
    %702 = vmatpush.msra.mxu0 %v73
    %703 = vmatpush.msra.mxu0 %v72
    %704 = vmatpush.msra.mxu0 %v71
    %705 = vmatmul.f32.gmra.mxu0 %v687
    %v706 = vpop.f32.mrf.mxu0
    %v707 = vadd.f32 0.0, %v706
    %708 = vdwg.mxu0
    %v709 = vadd.f32 %v641, %v707
    %v710 = vtanh.pop %v709
    %v711 = vmul.f32 %v55, %v710
    %v712 = vadd.f32 %v711, %v56
    %v713 = vmul.f32 %v712, %v611
    %715 = vrot.lane.b32.xlu0 %v712, 64
    %v716 = vpop.permute.xlu0 %715
    %v718 = vmul.f32 %v712, %v716
    %720 = vrot.lane.b32.xlu0 %v718, 32
    %v721 = vpop.permute.xlu0 %720
    %v723 = vadd.f32 %v713, %v721
    %v724 = vtanh.pop %v723
    %726 = vrot.lane.b32.xlu0 %v724, 64
    %v727 = vpop.permute.xlu0 %726
    %v729 = vmul.f32 %v712, %v727
    %731 = vrot.lane.b32.xlu0 %v729, 32
    %v732 = vpop.permute.xlu0 %731
    %v733 = vsel %vm171, %v732, 0
    %735 = vmatpush.msra.mxu0 0.0
    %736 = vmatpush.msra.mxu0 0.0
    %737 = vmatpush.msra.mxu0 0.0
    %738 = vmatpush.msra.mxu0 0.0
    %739 = vmatpush.msra.mxu0 0.0
    %740 = vmatpush.msra.mxu0 0.0
    %741 = vmatpush.msra.mxu0 0.0
    %742 = vmatpush.msra.mxu0 0.0
    %743 = vmatpush.msra.mxu0 0.0
    %744 = vmatpush.msra.mxu0 0.0
    %745 = vmatpush.msra.mxu0 0.0
    %746 = vmatpush.msra.mxu0 0.0
    %747 = vmatpush.msra.mxu0 %v82
    %748 = vmatpush.msra.mxu0 %v81
    %749 = vmatpush.msra.mxu0 %v80
    %750 = vmatpush.msra.mxu0 %v79
    %751 = vmatmul.f32.gmra.mxu0 %v733
    %v752 = vpop.f32.mrf.mxu0
    %v753 = vadd.f32 %v169, %v752
    %754 = vdwg.mxu0
    %755 = vmatpush.msra.mxu0 0.0
    %756 = vmatpush.msra.mxu0 0.0
    %757 = vmatpush.msra.mxu0 0.0
    %758 = vmatpush.msra.mxu0 0.0
    %759 = vmatpush.msra.mxu0 0.0
    %760 = vmatpush.msra.mxu0 0.0
    %761 = vmatpush.msra.mxu0 0.0
    %762 = vmatpush.msra.mxu0 0.0
    %763 = vmatpush.msra.mxu0 0.0
    %764 = vmatpush.msra.mxu0 0.0
    %765 = vmatpush.msra.mxu0 0.0
    %766 = vmatpush.msra.mxu0 0.0
    %767 = vmatpush.msra.mxu0 %v66
    %768 = vmatpush.msra.mxu0 %v65
    %769 = vmatpush.msra.mxu0 %v64
    %770 = vmatpush.msra.mxu0 %v63
    %771 = vmatmul.f32.gmra.mxu0 %v687
    %v772 = vpop.f32.mrf.mxu0
    %v773 = vadd.f32 0.0, %v772
    %774 = vdwg.mxu0
    %v775 = vadd.f32 %v158, %v773
    %v776 = vtanh.pop %v775
    %v777 = vmul.f32 %v55, %v776
    %v778 = vadd.f32 %v777, %v56
    %v779 = vmul.f32 %v778, %v677
    %781 = vrot.lane.b32.xlu0 %v778, 64
    %v782 = vpop.permute.xlu0 %781
    %v784 = vmul.f32 %v778, %v782
    %786 = vrot.lane.b32.xlu0 %v784, 32
    %v787 = vpop.permute.xlu0 %786
    %v789 = vadd.f32 %v779, %v787
    %v790 = vtanh.pop %v789
    %792 = vrot.lane.b32.xlu0 %v790, 64
    %v793 = vpop.permute.xlu0 %792
    %v795 = vmul.f32 %v778, %v793
    %797 = vrot.lane.b32.xlu0 %v795, 32
    %v798 = vpop.permute.xlu0 %797
    %v799 = vsel %vm171, %v798, 0
    %801 = vmatpush.msra.mxu0 0.0
    %802 = vmatpush.msra.mxu0 0.0
    %803 = vmatpush.msra.mxu0 0.0
    %804 = vmatpush.msra.mxu0 0.0
    %805 = vmatpush.msra.mxu0 0.0
    %806 = vmatpush.msra.mxu0 0.0
    %807 = vmatpush.msra.mxu0 0.0
    %808 = vmatpush.msra.mxu0 0.0
    %809 = vmatpush.msra.mxu0 0.0
    %810 = vmatpush.msra.mxu0 0.0
    %811 = vmatpush.msra.mxu0 0.0
    %812 = vmatpush.msra.mxu0 0.0
    %813 = vmatpush.msra.mxu0 %v74
    %814 = vmatpush.msra.mxu0 %v73
    %815 = vmatpush.msra.mxu0 %v72
    %816 = vmatpush.msra.mxu0 %v71
    %817 = vmatmul.f32.gmra.mxu0 %v799
    %v818 = vpop.f32.mrf.mxu0
    %v819 = vadd.f32 0.0, %v818
    %820 = vdwg.mxu0
    %v821 = vadd.f32 %v753, %v819
    %v822 = vtanh.pop %v821
    %v823 = vmul.f32 %v55, %v822
    %v824 = vadd.f32 %v823, %v56
    %v825 = vmul.f32 %v824, %v723
    %827 = vrot.lane.b32.xlu0 %v824, 64
    %v828 = vpop.permute.xlu0 %827
    %v830 = vmul.f32 %v824, %v828
    %832 = vrot.lane.b32.xlu0 %v830, 32
    %v833 = vpop.permute.xlu0 %832
    %v835 = vadd.f32 %v825, %v833
    %v836 = vtanh.pop %v835
    %838 = vrot.lane.b32.xlu0 %v836, 64
    %v839 = vpop.permute.xlu0 %838
    %v841 = vmul.f32 %v824, %v839
    %843 = vrot.lane.b32.xlu0 %v841, 32
    %v844 = vpop.permute.xlu0 %843
    %v845 = vsel %vm171, %v844, 0
    %847 = vmatpush.msra.mxu0 0.0
    %848 = vmatpush.msra.mxu0 0.0
    %849 = vmatpush.msra.mxu0 0.0
    %850 = vmatpush.msra.mxu0 0.0
    %851 = vmatpush.msra.mxu0 0.0
    %852 = vmatpush.msra.mxu0 0.0
    %853 = vmatpush.msra.mxu0 0.0
    %854 = vmatpush.msra.mxu0 0.0
    %855 = vmatpush.msra.mxu0 0.0
    %856 = vmatpush.msra.mxu0 0.0
    %857 = vmatpush.msra.mxu0 0.0
    %858 = vmatpush.msra.mxu0 0.0
    %859 = vmatpush.msra.mxu0 %v82
    %860 = vmatpush.msra.mxu0 %v81
    %861 = vmatpush.msra.mxu0 %v80
    %862 = vmatpush.msra.mxu0 %v79
    %863 = vmatmul.f32.gmra.mxu0 %v845
    %v864 = vpop.f32.mrf.mxu0
    %v865 = vadd.f32 %v169, %v864
    %866 = vdwg.mxu0
    %867 = vmatpush.msra.mxu0 0.0
    %868 = vmatpush.msra.mxu0 0.0
    %869 = vmatpush.msra.mxu0 0.0
    %870 = vmatpush.msra.mxu0 0.0
    %871 = vmatpush.msra.mxu0 0.0
    %872 = vmatpush.msra.mxu0 0.0
    %873 = vmatpush.msra.mxu0 0.0
    %874 = vmatpush.msra.mxu0 0.0
    %875 = vmatpush.msra.mxu0 0.0
    %876 = vmatpush.msra.mxu0 0.0
    %877 = vmatpush.msra.mxu0 0.0
    %878 = vmatpush.msra.mxu0 0.0
    %879 = vmatpush.msra.mxu0 %v66
    %880 = vmatpush.msra.mxu0 %v65
    %881 = vmatpush.msra.mxu0 %v64
    %882 = vmatpush.msra.mxu0 %v63
    %883 = vmatmul.f32.gmra.mxu0 %v799
    %v884 = vpop.f32.mrf.mxu0
    %v885 = vadd.f32 0.0, %v884
    %886 = vdwg.mxu0
    %v887 = vadd.f32 %v161, %v885
    %v888 = vtanh.pop %v887
    %v889 = vmul.f32 %v55, %v888
    %v890 = vadd.f32 %v889, %v56
    %v891 = vmul.f32 %v890, %v789
    %893 = vrot.lane.b32.xlu0 %v890, 64
    %v894 = vpop.permute.xlu0 %893
    %v896 = vmul.f32 %v890, %v894
    %898 = vrot.lane.b32.xlu0 %v896, 32
    %v899 = vpop.permute.xlu0 %898
    %v901 = vadd.f32 %v891, %v899
    %v902 = vtanh.pop %v901
    %904 = vrot.lane.b32.xlu0 %v902, 64
    %v905 = vpop.permute.xlu0 %904
    %v907 = vmul.f32 %v890, %v905
    %909 = vrot.lane.b32.xlu0 %v907, 32
    %v910 = vpop.permute.xlu0 %909
    %v911 = vsel %vm171, %v910, 0
    %913 = vmatpush.msra.mxu0 0.0
    %914 = vmatpush.msra.mxu0 0.0
    %915 = vmatpush.msra.mxu0 0.0
    %916 = vmatpush.msra.mxu0 0.0
    %917 = vmatpush.msra.mxu0 0.0
    %918 = vmatpush.msra.mxu0 0.0
    %919 = vmatpush.msra.mxu0 0.0
    %920 = vmatpush.msra.mxu0 0.0
    %921 = vmatpush.msra.mxu0 0.0
    %922 = vmatpush.msra.mxu0 0.0
    %923 = vmatpush.msra.mxu0 0.0
    %924 = vmatpush.msra.mxu0 0.0
    %925 = vmatpush.msra.mxu0 %v74
    %926 = vmatpush.msra.mxu0 %v73
    %927 = vmatpush.msra.mxu0 %v72
    %928 = vmatpush.msra.mxu0 %v71
    %929 = vmatmul.f32.gmra.mxu0 %v911
    %v930 = vpop.f32.mrf.mxu0
    %v931 = vadd.f32 0.0, %v930
    %932 = vdwg.mxu0
    %v933 = vadd.f32 %v865, %v931
    %v934 = vtanh.pop %v933
    %v935 = vmul.f32 %v55, %v934
    %v936 = vadd.f32 %v935, %v56
    %v937 = vmul.f32 %v936, %v835
    %939 = vrot.lane.b32.xlu0 %v936, 64
    %v940 = vpop.permute.xlu0 %939
    %v942 = vmul.f32 %v936, %v940
    %944 = vrot.lane.b32.xlu0 %v942, 32
    %v945 = vpop.permute.xlu0 %944
    %v947 = vadd.f32 %v937, %v945
    %v948 = vtanh.pop %v947
    %950 = vrot.lane.b32.xlu0 %v948, 64
    %v951 = vpop.permute.xlu0 %950
    %v953 = vmul.f32 %v936, %v951
    %955 = vrot.lane.b32.xlu0 %v953, 32
    %v956 = vpop.permute.xlu0 %955
    %v957 = vsel %vm171, %v956, 0
    %959 = vmatpush.msra.mxu0 0.0
    %960 = vmatpush.msra.mxu0 0.0
    %961 = vmatpush.msra.mxu0 0.0
    %962 = vmatpush.msra.mxu0 0.0
    %963 = vmatpush.msra.mxu0 0.0
    %964 = vmatpush.msra.mxu0 0.0
    %965 = vmatpush.msra.mxu0 0.0
    %966 = vmatpush.msra.mxu0 0.0
    %967 = vmatpush.msra.mxu0 0.0
    %968 = vmatpush.msra.mxu0 0.0
    %969 = vmatpush.msra.mxu0 0.0
    %970 = vmatpush.msra.mxu0 0.0
    %971 = vmatpush.msra.mxu0 %v82
    %972 = vmatpush.msra.mxu0 %v81
    %973 = vmatpush.msra.mxu0 %v80
    %974 = vmatpush.msra.mxu0 %v79
    %975 = vmatmul.f32.gmra.mxu0 %v957
    %v976 = vpop.f32.mrf.mxu0
    %v977 = vadd.f32 %v169, %v976
    %978 = vdwg.mxu0
    %979 = vmatpush.msra.mxu0 0.0
    %980 = vmatpush.msra.mxu0 0.0
    %981 = vmatpush.msra.mxu0 0.0
    %982 = vmatpush.msra.mxu0 0.0
    %983 = vmatpush.msra.mxu0 0.0
    %984 = vmatpush.msra.mxu0 0.0
    %985 = vmatpush.msra.mxu0 0.0
    %986 = vmatpush.msra.mxu0 0.0
    %987 = vmatpush.msra.mxu0 0.0
    %988 = vmatpush.msra.mxu0 0.0
    %989 = vmatpush.msra.mxu0 0.0
    %990 = vmatpush.msra.mxu0 0.0
    %991 = vmatpush.msra.mxu0 %v66
    %992 = vmatpush.msra.mxu0 %v65
    %993 = vmatpush.msra.mxu0 %v64
    %994 = vmatpush.msra.mxu0 %v63
    %995 = vmatmul.f32.gmra.mxu0 %v911
    %v996 = vpop.f32.mrf.mxu0
    %v997 = vadd.f32 0.0, %v996
    %998 = vdwg.mxu0
    %v999 = vadd.f32 %v164, %v997
    %v1000 = vtanh.pop %v999
    %v1001 = vmul.f32 %v55, %v1000
    %v1002 = vadd.f32 %v1001, %v56
    %v1003 = vmul.f32 %v1002, %v901
    %1005 = vrot.lane.b32.xlu0 %v1002, 64
    %v1006 = vpop.permute.xlu0 %1005
    %v1008 = vmul.f32 %v1002, %v1006
    %1010 = vrot.lane.b32.xlu0 %v1008, 32
    %v1011 = vpop.permute.xlu0 %1010
    %v1013 = vadd.f32 %v1003, %v1011
    %v1014 = vtanh.pop %v1013
    %1016 = vrot.lane.b32.xlu0 %v1014, 64
    %v1017 = vpop.permute.xlu0 %1016
    %v1019 = vmul.f32 %v1002, %v1017
    %1021 = vrot.lane.b32.xlu0 %v1019, 32
    %v1022 = vpop.permute.xlu0 %1021
    %v1023 = vsel %vm171, %v1022, 0
    %1025 = vmatpush.msra.mxu0 0.0
    %1026 = vmatpush.msra.mxu0 0.0
    %1027 = vmatpush.msra.mxu0 0.0
    %1028 = vmatpush.msra.mxu0 0.0
    %1029 = vmatpush.msra.mxu0 0.0
    %1030 = vmatpush.msra.mxu0 0.0
    %1031 = vmatpush.msra.mxu0 0.0
    %1032 = vmatpush.msra.mxu0 0.0
    %1033 = vmatpush.msra.mxu0 0.0
    %1034 = vmatpush.msra.mxu0 0.0
    %1035 = vmatpush.msra.mxu0 0.0
    %1036 = vmatpush.msra.mxu0 0.0
    %1037 = vmatpush.msra.mxu0 %v74
    %1038 = vmatpush.msra.mxu0 %v73
    %1039 = vmatpush.msra.mxu0 %v72
    %1040 = vmatpush.msra.mxu0 %v71
    %1041 = vmatmul.f32.gmra.mxu0 %v1023
    %v1042 = vpop.f32.mrf.mxu0
    %v1043 = vadd.f32 0.0, %v1042
    %1044 = vdwg.mxu0
    %v1045 = vadd.f32 %v977, %v1043
    %v1046 = vtanh.pop %v1045
    %v1047 = vmul.f32 %v55, %v1046
    %v1048 = vadd.f32 %v1047, %v56
    %v1049 = vmul.f32 %v1048, %v947
    %1051 = vrot.lane.b32.xlu0 %v1048, 64
    %v1052 = vpop.permute.xlu0 %1051
    %v1054 = vmul.f32 %v1048, %v1052
    %1056 = vrot.lane.b32.xlu0 %v1054, 32
    %v1057 = vpop.permute.xlu0 %1056
    %v1059 = vadd.f32 %v1049, %v1057
    %v1060 = vtanh.pop %v1059
    %1062 = vrot.lane.b32.xlu0 %v1060, 64
    %v1063 = vpop.permute.xlu0 %1062
    %v1065 = vmul.f32 %v1048, %v1063
    %v1066 = vld [vmem:[%s7] sm:$0x1]
    %v1068 = vperm.slane %v1066, 0
    %1069 = vrot.lane.b32.xlu0 %v1068, 96
    %v1070 = vpop.permute.xlu0 %1069
    %v1072 = vmul.f32 %v1065, %v1070
    %1074 = vrot.lane.b32.xlu0 %v1072, 32
    %v1075 = vpop.permute.xlu0 %1074
    %v1077 = vsel %vm171, %v1075, 0.0
    %1078 = vadd.xlane.f32.xlu0 %v1077
    %v1079 = vpop.xlane.xlu0 %1078
    %v1080 = vld [vmem:[#allocation2] sm:$0x1]
    %v1082 = vperm.slane %v1080, 0
    %v1084 = vadd.f32 %v1079, %v1082
    %v1085 = vmul.f32 %v1084, 0.5
    %v1086 = vtanh.pop %v1085
    %v1087 = vmul.f32 %v1086, 0.5
    %v1088 = vadd.f32 %v1087, 0.5
    %vm1089 = vcmask 7168
    %1090 = vst.msk [vmem:[%s9] sm:$0xff] %vm1089, %v1088
    // Predicated region
    $region42: #{tpu_custom_call.1} parent=1 // pred_check
      _
    $region43: #{tpu_custom_call.1} parent=1 // pred_check_branch
      %1092 = sbr.rel (0) target = $region45
    $region44: #{tpu_custom_call.1} parent=1 // pred_region
      _
    $region45: #{tpu_custom_call.1} parent=1 // pred_fallthru
      _
    // Predicated region
    $region46: #{tpu_custom_call.1} parent=1 // pred_check
      _
    $region47: #{tpu_custom_call.1} parent=1 // pred_check_branch
      %1094 = sbr.rel (0) target = $region49
    $region48: #{tpu_custom_call.1} parent=1 // pred_region
      _
    $region49: #{tpu_custom_call.1} parent=1 // pred_fallthru
      _
    %1095 = vsyncpa [#allocation4], 1

</llo_original>
